<compile_context>
chip_gen: v7x
topology: tpu7x:2x2x1
jax: 0.10.0
libtpu: 0.0.40
codegen_flags: <defaults>
</compile_context>

<pallas_src>
import math

import jax
import jax.numpy as jnp
from jax.experimental import pallas as pl
from jax.experimental.pallas import tpu as pltpu


def _round_up(x, m):
    return -(-x // m) * m


def _cdiv(a, b):
    return -(-a // b)


# ----------------------------------------------------------------------------
# Conv3d, kernel 3, stride 2, padding 1 (EnDown) -- NCDHW in, NCDHW out
# ----------------------------------------------------------------------------
def conv3d_k3s2p1(x, w, b, *, compute_dtype=jnp.bfloat16):
    """x: (N, Cin, D, H, W) f32; w: (Cout, Cin, 3, 3, 3) f32 (PyTorch layout);
    b: (Cout,) f32.  Returns (N, Cout, Do, Ho, Wo) f32."""
    N, Cin, D, H, W = x.shape
    Cout = w.shape[0]
    Do = (D - 1) // 2 + 1
    Ho = (H - 1) // 2 + 1
    Wo = (W - 1) // 2 + 1
    K = 27 * Cin

    # Phase-split geometry: padded H/W are split into even/odd phases so the
    # stride-2 tap extraction becomes contiguous slicing inside the kernel.
    Wq = Wo + 1                   # phase-plane width  (+1 halo column, kw=2)
    Hq = Ho + 2                   # phase-plane height (+1 halo row for kh=2,
    #                               +1 so flattened slices never run off-plane)
    M = Hq * Wq                   # flattened (hq, wq) plane -> input lane axis
    Mv = Ho * Wq                  # patch lanes per output plane (1 junk col/row)
    Mout = _round_up(Mv, 128)     # lane-dense per-plane stride in the output

    # ---- choose Td = output-D planes per grid step (VMEM cost model) -------
    isz = jnp.dtype(compute_dtype).itemsize
    per_plane = ((2 * 4 * Cin * M * isz) * 2          # 2 dp-planes, dbl-buffered
                 + (Mout * Cout * 4) * 2              # output chunk, dbl-buffered
                 + 27 * Cin * Mv * isz                # in-kernel patch temp
                 + Cout * Mv * 4)                     # f32 accumulator
    budget = 12 << 20
    Td = max(1, min(Do, 8, budget // max(per_plane, 1)))
    # v7x has 2 TensorCores sharded over "parallel" grid axes: keep >= 8
    # programs when the problem allows it.
    while Td > 1 and N * _cdiv(Do, Td) < 8:
        Td = max(1, Td // 2)
    nD = _cdiv(Do, Td)
    Do_pad = Td * nD
    Dp = 2 * Do_pad + 1           # padded-D planes (covers dp = 2*od + kd)

    # ---- single prep pass: pad + (H,W) phase split + bf16 cast --------------
    # xq[n, dp, 2*ph+pw, ci, hq*Wq+wq] = xpad[n, ci, dp, 2*hq+ph, 2*wq+pw]
    xq = jnp.pad(x, ((0, 0), (0, 0),
                     (1, Dp - (D + 1)),
                     (1, 2 * Hq - (H + 1)),
                     (1, 2 * Wq - (W + 1))))
    xq = xq.reshape(N, Cin, Dp, Hq, 2, Wq, 2)
    xq = xq.transpose(0, 2, 4, 6, 1, 3, 5)            # (N, Dp, 2, 2, Cin, Hq, Wq)
    xq = xq.reshape(N, Dp, 4, Cin, M).astype(compute_dtype)

    # Weight (Cout, Cin, 3,3,3) -> (Cout, 27*Cin), tap-major K to match the
    # in-kernel concat order ((kd,kh,kw) major, ci minor).
    w2 = jnp.transpose(w, (0, 2, 3, 4, 1)).reshape(Cout, K).astype(compute_dtype)
    b2 = b.reshape(Cout, 1).astype(jnp.float32)

    # ---- kernel: in-kernel im2col + one (Cout,K)@(K,Mv) matmul per plane ----
    def kernel(xm_ref, xh_ref, w_ref, b_ref, o_ref):
        # xm_ref: (2*Td, 4, Cin, M)  main dp planes [2*Td*dt, 2*Td*(dt+1))
        # xh_ref: (1,    4, Cin, M)  halo plane dp = 2*Td*(dt+1)
        # w_ref : (Cout, 27*Cin)     bf16
        # b_ref : (Cout, 1)          f32
        # o_ref : (Cout, Td*Mout)    f32 (lane-dense, NCDHW order)
        wv = w_ref[...]
        bv = b_ref[...]
        for od in range(Td):                              # static unroll
            taps = []
            for kd in range(3):
                dp = 2 * od + kd
                for kh in range(3):
                    ph, dh = kh % 2, kh // 2              # phase / +1 offset
                    for kw in range(3):
                        pw, dw = kw % 2, kw // 2
                        off = dh * Wq + dw                # contiguous lane slice
                        if dp < 2 * Td:
                            sl = xm_ref[dp, 2 * ph + pw, :, pl.ds(off, Mv)]
                        else:
                            sl = xh_ref[0, 2 * ph + pw, :, pl.ds(off, Mv)]
                        taps.append(sl)                   # (Cin, Mv)
            patch = jnp.concatenate(taps, axis=0)         # (27*Cin, Mv)
            acc = jnp.dot(wv, patch, preferred_element_type=jnp.float32)
            o_ref[:, pl.ds(od * Mout, Mv)] = acc + bv

    # Explicit VMEM budget, capped at 40 MiB so it is safe on v7x (64 MiB/TC)
    # as well as v5e/v6e (128 MiB).
    vmem_est = (((2 * Td + 1) * 4 * Cin * M * isz) * 2
                + (Td * Mout * Cout * 4) * 2
                + (27 * Cin * Mv * isz + Cout * Mv * 4) * 2
                + K * Cout * isz * 2 + Cout * 4 * 2 + (2 << 20))
    vmem_limit = int(min(max(2 * vmem_est, 16 << 20), 40 << 20))

    out = pl.pallas_call(
        kernel,
        out_shape=jax.ShapeDtypeStruct((N, Cout, Do_pad * Mout), jnp.float32),
        grid=(N, nD),
        in_specs=[
            # main D block (2*Td planes)
            pl.BlockSpec((None, 2 * Td, 4, Cin, M),
                         lambda n, d: (n, d, 0, 0, 0)),
            # 1-plane D halo, shared with the next tile (same array, 2nd spec)
            pl.BlockSpec((None, 1, 4, Cin, M),
                         lambda n, d: (n, 2 * Td * (d + 1), 0, 0, 0)),
            pl.BlockSpec((Cout, K), lambda n, d: (0, 0)),      # weight (constant)
            pl.BlockSpec((Cout, 1), lambda n, d: (0, 0)),      # bias   (constant)
        ],
        out_specs=pl.BlockSpec((None, Cout, Td * Mout), lambda n, d: (n, 0, d)),
        compiler_params=pltpu.CompilerParams(
            dimension_semantics=("parallel", "parallel"),
            vmem_limit_bytes=vmem_limit),
    )(xq, xq, w2, b2)

    # Strip the D padding and the junk lane per output row; already NCDHW.
    y = out.reshape(N, Cout, Do_pad, Mout)[:, :, :Do, :Mv]
    y = y.reshape(N, Cout, Do, Ho, Wq)[..., :Wo]
    return y


# ----------------------------------------------------------------------------
# EnDown.forward (NCDHW in / NCDHW out, PyTorch parameter layout)
# ----------------------------------------------------------------------------
def en_down(params, x_ncdhw):
    return conv3d_k3s2p1(x_ncdhw, params["w"], params["b"])


# ----------------------------------------------------------------------------
# Reference (plain JAX) on the same bf16-rounded operands, f32 accumulation
# ----------------------------------------------------------------------------
def en_down_ref(params, x_ncdhw):
    xr = x_ncdhw.astype(jnp.bfloat16).astype(jnp.float32)
    wr = jnp.transpose(params["w"], (2, 3, 4, 1, 0))
    wr = wr.astype(jnp.bfloat16).astype(jnp.float32)
    y = jax.lax.conv_general_dilated(
        jnp.transpose(xr, (0, 2, 3, 4, 1)), wr,
        window_strides=(2, 2, 2), padding=((1, 1), (1, 1), (1, 1)),
        dimension_numbers=("NDHWC", "DHWIO", "NDHWC"))
    y = y + params["b"].reshape(1, 1, 1, 1, -1)
    return jnp.transpose(y, (0, 4, 1, 2, 3))


if __name__ == "__main__":
    # EnDown(16, 32) on a (2, 16, 16, 16, 16) NCDHW input -> (2, 32, 8, 8, 8)
    in_channels, out_channels = 16, 32
    kx, kw, kb = jax.random.split(jax.random.PRNGKey(0), 3)
    x = jax.random.normal(kx, (2, in_channels, 16, 16, 16), jnp.float32)
    params = {
        "w": jax.random.normal(kw, (out_channels, in_channels, 3, 3, 3),
                               jnp.float32) / math.sqrt(in_channels * 27),
        "b": 0.01 * jax.random.normal(kb, (out_channels,), jnp.float32),
    }

    fwd = jax.jit(en_down)
    y = fwd(params, x)
    jax.block_until_ready(y)
    assert y.shape == (2, out_channels, 8, 8, 8), y.shape

    y_ref = en_down_ref(params, x)
    err = float(jnp.max(jnp.abs(y - y_ref)))
    assert err < 1e-2, f"max abs err {err}"

    print("KERNEL_OK")
</pallas_src>

<mosaic_0001>
module attributes {stable_mosaic.version = 11 : i64} {
  func.func @kernel(%arg0: i32, %arg1: i32, %arg2: memref<1x4x4x16x90xbf16, #tpu.memory_space<vmem>>, %arg3: memref<1x1x4x16x90xbf16, #tpu.memory_space<vmem>>, %arg4: memref<32x432xbf16, #tpu.memory_space<vmem>>, %arg5: memref<32x1xf32, #tpu.memory_space<vmem>>, %arg6: memref<1x32x256xf32, #tpu.memory_space<vmem>>) attributes {dimension_semantics = [#tpu.dimension_semantics<parallel>, #tpu.dimension_semantics<parallel>], iteration_bounds = array<i64: 2, 4>, scalar_prefetch = 0 : i64, scratch_operands = 0 : i64, tpu.core_type = #tpu.core_type<tc>, window_params = [{transform_indices = @transform_0, window_bounds = array<i64: 1, 4, 4, 16, 90>}, {transform_indices = @transform_1, window_bounds = array<i64: 1, 1, 4, 16, 90>}, {pipeline_mode = #tpu.pipeline_mode<synchronous>, transform_indices = @transform_2, window_bounds = array<i64: 32, 432>}, {pipeline_mode = #tpu.pipeline_mode<synchronous>, transform_indices = @transform_3, window_bounds = array<i64: 32, 1>}, {transform_indices = @transform_4, window_bounds = array<i64: 1, 32, 256>}]} {
    %c0 = arith.constant 0 : index
    %c0_0 = arith.constant 0 : index
    %0 = vector.load %arg4[%c0, %c0_0] : memref<32x432xbf16, #tpu.memory_space<vmem>>, vector<32x432xbf16>
    %c0_1 = arith.constant 0 : index
    %c0_2 = arith.constant 0 : index
    %1 = vector.load %arg5[%c0_1, %c0_2] : memref<32x1xf32, #tpu.memory_space<vmem>>, vector<32x1xf32>
    %c0_3 = arith.constant 0 : index
    %c0_4 = arith.constant 0 : index
    %c0_5 = arith.constant 0 : index
    %c0_6 = arith.constant 0 : index
    %c0_7 = arith.constant 0 : index
    %2 = vector.load %arg2[%c0_3, %c0_4, %c0_5, %c0_6, %c0_7] : memref<1x4x4x16x90xbf16, #tpu.memory_space<vmem>>, vector<1x1x1x16x72xbf16>
    %3 = vector.shape_cast %2 : vector<1x1x1x16x72xbf16> to vector<16x72xbf16>
    %c0_8 = arith.constant 0 : index
    %c0_9 = arith.constant 0 : index
    %c1 = arith.constant 1 : index
    %c0_10 = arith.constant 0 : index
    %c0_11 = arith.constant 0 : index
    %4 = vector.load %arg2[%c0_8, %c0_9, %c1, %c0_10, %c0_11] : memref<1x4x4x16x90xbf16, #tpu.memory_space<vmem>>, vector<1x1x1x16x72xbf16>
    %5 = vector.shape_cast %4 : vector<1x1x1x16x72xbf16> to vector<16x72xbf16>
    %c0_12 = arith.constant 0 : index
    %c0_13 = arith.constant 0 : index
    %c0_14 = arith.constant 0 : index
    %c0_15 = arith.constant 0 : index
    %c1_16 = arith.constant 1 : index
    %6 = vector.load %arg2[%c0_12, %c0_13, %c0_14, %c0_15, %c1_16] : memref<1x4x4x16x90xbf16, #tpu.memory_space<vmem>>, vector<1x1x1x16x72xbf16>
    %7 = vector.shape_cast %6 : vector<1x1x1x16x72xbf16> to vector<16x72xbf16>
    %c0_17 = arith.constant 0 : index
    %c0_18 = arith.constant 0 : index
    %c2 = arith.constant 2 : index
    %c0_19 = arith.constant 0 : index
    %c0_20 = arith.constant 0 : index
    %8 = vector.load %arg2[%c0_17, %c0_18, %c2, %c0_19, %c0_20] : memref<1x4x4x16x90xbf16, #tpu.memory_space<vmem>>, vector<1x1x1x16x72xbf16>
    %9 = vector.shape_cast %8 : vector<1x1x1x16x72xbf16> to vector<16x72xbf16>
    %c0_21 = arith.constant 0 : index
    %c0_22 = arith.constant 0 : index
    %c3 = arith.constant 3 : index
    %c0_23 = arith.constant 0 : index
    %c0_24 = arith.constant 0 : index
    %10 = vector.load %arg2[%c0_21, %c0_22, %c3, %c0_23, %c0_24] : memref<1x4x4x16x90xbf16, #tpu.memory_space<vmem>>, vector<1x1x1x16x72xbf16>
    %11 = vector.shape_cast %10 : vector<1x1x1x16x72xbf16> to vector<16x72xbf16>
    %c0_25 = arith.constant 0 : index
    %c0_26 = arith.constant 0 : index
    %c2_27 = arith.constant 2 : index
    %c0_28 = arith.constant 0 : index
    %c1_29 = arith.constant 1 : index
    %12 = vector.load %arg2[%c0_25, %c0_26, %c2_27, %c0_28, %c1_29] : memref<1x4x4x16x90xbf16, #tpu.memory_space<vmem>>, vector<1x1x1x16x72xbf16>
    %13 = vector.shape_cast %12 : vector<1x1x1x16x72xbf16> to vector<16x72xbf16>
    %c0_30 = arith.constant 0 : index
    %c0_31 = arith.constant 0 : index
    %c0_32 = arith.constant 0 : index
    %c0_33 = arith.constant 0 : index
    %c9 = arith.constant 9 : index
    %14 = vector.load %arg2[%c0_30, %c0_31, %c0_32, %c0_33, %c9] : memref<1x4x4x16x90xbf16, #tpu.memory_space<vmem>>, vector<1x1x1x16x72xbf16>
    %15 = vector.shape_cast %14 : vector<1x1x1x16x72xbf16> to vector<16x72xbf16>
    %c0_34 = arith.constant 0 : index
    %c0_35 = arith.constant 0 : index
    %c1_36 = arith.constant 1 : index
    %c0_37 = arith.constant 0 : index
    %c9_38 = arith.constant 9 : index
    %16 = vector.load %arg2[%c0_34, %c0_35, %c1_36, %c0_37, %c9_38] : memref<1x4x4x16x90xbf16, #tpu.memory_space<vmem>>, vector<1x1x1x16x72xbf16>
    %17 = vector.shape_cast %16 : vector<1x1x1x16x72xbf16> to vector<16x72xbf16>
    %c0_39 = arith.constant 0 : index
    %c0_40 = arith.constant 0 : index
    %c0_41 = arith.constant 0 : index
    %c0_42 = arith.constant 0 : index
    %c10 = arith.constant 10 : index
    %18 = vector.load %arg2[%c0_39, %c0_40, %c0_41, %c0_42, %c10] : memref<1x4x4x16x90xbf16, #tpu.memory_space<vmem>>, vector<1x1x1x16x72xbf16>
    %19 = vector.shape_cast %18 : vector<1x1x1x16x72xbf16> to vector<16x72xbf16>
    %c0_43 = arith.constant 0 : index
    %c1_44 = arith.constant 1 : index
    %c0_45 = arith.constant 0 : index
    %c0_46 = arith.constant 0 : index
    %c0_47 = arith.constant 0 : index
    %20 = vector.load %arg2[%c0_43, %c1_44, %c0_45, %c0_46, %c0_47] : memref<1x4x4x16x90xbf16, #tpu.memory_space<vmem>>, vector<1x1x1x16x72xbf16>
    %21 = vector.shape_cast %20 : vector<1x1x1x16x72xbf16> to vector<16x72xbf16>
    %c0_48 = arith.constant 0 : index
    %c1_49 = arith.constant 1 : index
    %c1_50 = arith.constant 1 : index
    %c0_51 = arith.constant 0 : index
    %c0_52 = arith.constant 0 : index
    %22 = vector.load %arg2[%c0_48, %c1_49, %c1_50, %c0_51, %c0_52] : memref<1x4x4x16x90xbf16, #tpu.memory_space<vmem>>, vector<1x1x1x16x72xbf16>
    %23 = vector.shape_cast %22 : vector<1x1x1x16x72xbf16> to vector<16x72xbf16>
    %c0_53 = arith.constant 0 : index
    %c1_54 = arith.constant 1 : index
    %c0_55 = arith.constant 0 : index
    %c0_56 = arith.constant 0 : index
    %c1_57 = arith.constant 1 : index
    %24 = vector.load %arg2[%c0_53, %c1_54, %c0_55, %c0_56, %c1_57] : memref<1x4x4x16x90xbf16, #tpu.memory_space<vmem>>, vector<1x1x1x16x72xbf16>
    %25 = vector.shape_cast %24 : vector<1x1x1x16x72xbf16> to vector<16x72xbf16>
    %c0_58 = arith.constant 0 : index
    %c1_59 = arith.constant 1 : index
    %c2_60 = arith.constant 2 : index
    %c0_61 = arith.constant 0 : index
    %c0_62 = arith.constant 0 : index
    %26 = vector.load %arg2[%c0_58, %c1_59, %c2_60, %c0_61, %c0_62] : memref<1x4x4x16x90xbf16, #tpu.memory_space<vmem>>, vector<1x1x1x16x72xbf16>
    %27 = vector.shape_cast %26 : vector<1x1x1x16x72xbf16> to vector<16x72xbf16>
    %c0_63 = arith.constant 0 : index
    %c1_64 = arith.constant 1 : index
    %c3_65 = arith.constant 3 : index
    %c0_66 = arith.constant 0 : index
    %c0_67 = arith.constant 0 : index
    %28 = vector.load %arg2[%c0_63, %c1_64, %c3_65, %c0_66, %c0_67] : memref<1x4x4x16x90xbf16, #tpu.memory_space<vmem>>, vector<1x1x1x16x72xbf16>
    %29 = vector.shape_cast %28 : vector<1x1x1x16x72xbf16> to vector<16x72xbf16>
    %c0_68 = arith.constant 0 : index
    %c1_69 = arith.constant 1 : index
    %c2_70 = arith.constant 2 : index
    %c0_71 = arith.constant 0 : index
    %c1_72 = arith.constant 1 : index
    %30 = vector.load %arg2[%c0_68, %c1_69, %c2_70, %c0_71, %c1_72] : memref<1x4x4x16x90xbf16, #tpu.memory_space<vmem>>, vector<1x1x1x16x72xbf16>
    %31 = vector.shape_cast %30 : vector<1x1x1x16x72xbf16> to vector<16x72xbf16>
    %c0_73 = arith.constant 0 : index
    %c1_74 = arith.constant 1 : index
    %c0_75 = arith.constant 0 : index
    %c0_76 = arith.constant 0 : index
    %c9_77 = arith.constant 9 : index
    %32 = vector.load %arg2[%c0_73, %c1_74, %c0_75, %c0_76, %c9_77] : memref<1x4x4x16x90xbf16, #tpu.memory_space<vmem>>, vector<1x1x1x16x72xbf16>
    %33 = vector.shape_cast %32 : vector<1x1x1x16x72xbf16> to vector<16x72xbf16>
    %c0_78 = arith.constant 0 : index
    %c1_79 = arith.constant 1 : index
    %c1_80 = arith.constant 1 : index
    %c0_81 = arith.constant 0 : index
    %c9_82 = arith.constant 9 : index
    %34 = vector.load %arg2[%c0_78, %c1_79, %c1_80, %c0_81, %c9_82] : memref<1x4x4x16x90xbf16, #tpu.memory_space<vmem>>, vector<1x1x1x16x72xbf16>
    %35 = vector.shape_cast %34 : vector<1x1x1x16x72xbf16> to vector<16x72xbf16>
    %c0_83 = arith.constant 0 : index
    %c1_84 = arith.constant 1 : index
    %c0_85 = arith.constant 0 : index
    %c0_86 = arith.constant 0 : index
    %c10_87 = arith.constant 10 : index
    %36 = vector.load %arg2[%c0_83, %c1_84, %c0_85, %c0_86, %c10_87] : memref<1x4x4x16x90xbf16, #tpu.memory_space<vmem>>, vector<1x1x1x16x72xbf16>
    %37 = vector.shape_cast %36 : vector<1x1x1x16x72xbf16> to vector<16x72xbf16>
    %c0_88 = arith.constant 0 : index
    %c2_89 = arith.constant 2 : index
    %c0_90 = arith.constant 0 : index
    %c0_91 = arith.constant 0 : index
    %c0_92 = arith.constant 0 : index
    %38 = vector.load %arg2[%c0_88, %c2_89, %c0_90, %c0_91, %c0_92] : memref<1x4x4x16x90xbf16, #tpu.memory_space<vmem>>, vector<1x1x1x16x72xbf16>
    %39 = vector.shape_cast %38 : vector<1x1x1x16x72xbf16> to vector<16x72xbf16>
    %c0_93 = arith.constant 0 : index
    %c2_94 = arith.constant 2 : index
    %c1_95 = arith.constant 1 : index
    %c0_96 = arith.constant 0 : index
    %c0_97 = arith.constant 0 : index
    %40 = vector.load %arg2[%c0_93, %c2_94, %c1_95, %c0_96, %c0_97] : memref<1x4x4x16x90xbf16, #tpu.memory_space<vmem>>, vector<1x1x1x16x72xbf16>
    %41 = vector.shape_cast %40 : vector<1x1x1x16x72xbf16> to vector<16x72xbf16>
    %c0_98 = arith.constant 0 : index
    %c2_99 = arith.constant 2 : index
    %c0_100 = arith.constant 0 : index
    %c0_101 = arith.constant 0 : index
    %c1_102 = arith.constant 1 : index
    %42 = vector.load %arg2[%c0_98, %c2_99, %c0_100, %c0_101, %c1_102] : memref<1x4x4x16x90xbf16, #tpu.memory_space<vmem>>, vector<1x1x1x16x72xbf16>
    %43 = vector.shape_cast %42 : vector<1x1x1x16x72xbf16> to vector<16x72xbf16>
    %c0_103 = arith.constant 0 : index
    %c2_104 = arith.constant 2 : index
    %c2_105 = arith.constant 2 : index
    %c0_106 = arith.constant 0 : index
    %c0_107 = arith.constant 0 : index
    %44 = vector.load %arg2[%c0_103, %c2_104, %c2_105, %c0_106, %c0_107] : memref<1x4x4x16x90xbf16, #tpu.memory_space<vmem>>, vector<1x1x1x16x72xbf16>
    %45 = vector.shape_cast %44 : vector<1x1x1x16x72xbf16> to vector<16x72xbf16>
    %c0_108 = arith.constant 0 : index
    %c2_109 = arith.constant 2 : index
    %c3_110 = arith.constant 3 : index
    %c0_111 = arith.constant 0 : index
    %c0_112 = arith.constant 0 : index
    %46 = vector.load %arg2[%c0_108, %c2_109, %c3_110, %c0_111, %c0_112] : memref<1x4x4x16x90xbf16, #tpu.memory_space<vmem>>, vector<1x1x1x16x72xbf16>
    %47 = vector.shape_cast %46 : vector<1x1x1x16x72xbf16> to vector<16x72xbf16>
    %c0_113 = arith.constant 0 : index
    %c2_114 = arith.constant 2 : index
    %c2_115 = arith.constant 2 : index
    %c0_116 = arith.constant 0 : index
    %c1_117 = arith.constant 1 : index
    %48 = vector.load %arg2[%c0_113, %c2_114, %c2_115, %c0_116, %c1_117] : memref<1x4x4x16x90xbf16, #tpu.memory_space<vmem>>, vector<1x1x1x16x72xbf16>
    %49 = vector.shape_cast %48 : vector<1x1x1x16x72xbf16> to vector<16x72xbf16>
    %c0_118 = arith.constant 0 : index
    %c2_119 = arith.constant 2 : index
    %c0_120 = arith.constant 0 : index
    %c0_121 = arith.constant 0 : index
    %c9_122 = arith.constant 9 : index
    %50 = vector.load %arg2[%c0_118, %c2_119, %c0_120, %c0_121, %c9_122] : memref<1x4x4x16x90xbf16, #tpu.memory_space<vmem>>, vector<1x1x1x16x72xbf16>
    %51 = vector.shape_cast %50 : vector<1x1x1x16x72xbf16> to vector<16x72xbf16>
    %c0_123 = arith.constant 0 : index
    %c2_124 = arith.constant 2 : index
    %c1_125 = arith.constant 1 : index
    %c0_126 = arith.constant 0 : index
    %c9_127 = arith.constant 9 : index
    %52 = vector.load %arg2[%c0_123, %c2_124, %c1_125, %c0_126, %c9_127] : memref<1x4x4x16x90xbf16, #tpu.memory_space<vmem>>, vector<1x1x1x16x72xbf16>
    %53 = vector.shape_cast %52 : vector<1x1x1x16x72xbf16> to vector<16x72xbf16>
    %c0_128 = arith.constant 0 : index
    %c2_129 = arith.constant 2 : index
    %c0_130 = arith.constant 0 : index
    %c0_131 = arith.constant 0 : index
    %c10_132 = arith.constant 10 : index
    %54 = vector.load %arg2[%c0_128, %c2_129, %c0_130, %c0_131, %c10_132] : memref<1x4x4x16x90xbf16, #tpu.memory_space<vmem>>, vector<1x1x1x16x72xbf16>
    %55 = vector.shape_cast %54 : vector<1x1x1x16x72xbf16> to vector<16x72xbf16>
    %56 = tpu.concatenate %3, %5, %7, %9, %11, %13, %15, %17, %19, %21, %23, %25, %27, %29, %31, %33 in 0 : vector<16x72xbf16>, vector<16x72xbf16>, vector<16x72xbf16>, vector<16x72xbf16>, vector<16x72xbf16>, vector<16x72xbf16>, vector<16x72xbf16>, vector<16x72xbf16>, vector<16x72xbf16>, vector<16x72xbf16>, vector<16x72xbf16>, vector<16x72xbf16>, vector<16x72xbf16>, vector<16x72xbf16>, vector<16x72xbf16>, vector<16x72xbf16> -> vector<256x72xbf16>
    %57 = tpu.concatenate %35, %37, %39, %41, %43, %45, %47, %49, %51, %53, %55 in 0 : vector<16x72xbf16>, vector<16x72xbf16>, vector<16x72xbf16>, vector<16x72xbf16>, vector<16x72xbf16>, vector<16x72xbf16>, vector<16x72xbf16>, vector<16x72xbf16>, vector<16x72xbf16>, vector<16x72xbf16>, vector<16x72xbf16> -> vector<176x72xbf16>
    %58 = tpu.concatenate %56, %57 in 0 : vector<256x72xbf16>, vector<176x72xbf16> -> vector<432x72xbf16>
    %cst = arith.constant dense<0.000000e+00> : vector<32x72xf32>
    %59 = tpu.matmul %0, %58, %cst {dimension_numbers = #tpu.dot_dimension_numbers<[1], [0], [0], [1], [0, 0, 1, 1], [], []>} : vector<32x432xbf16>, vector<432x72xbf16>, vector<32x72xf32> -> vector<32x72xf32>
    %60 = vector.broadcast %1 : vector<32x1xf32> to vector<32x72xf32>
    %61 = arith.addf %59, %60 : vector<32x72xf32>
    %c0_133 = arith.constant 0 : index
    %c0_134 = arith.constant 0 : index
    %c0_135 = arith.constant 0 : index
    %62 = vector.load %arg6[%c0_133, %c0_134, %c0_135] : memref<1x32x256xf32, #tpu.memory_space<vmem>>, vector<1x32x72xf32>
    %63 = vector.shape_cast %62 : vector<1x32x72xf32> to vector<32x72xf32>
    %64 = vector.shape_cast %61 : vector<32x72xf32> to vector<1x32x72xf32>
    tpu.vector_store %arg6[%c0_133, %c0_134, %c0_135], %64 {strides = array<i32>} : memref<1x32x256xf32, #tpu.memory_space<vmem>>, vector<1x32x72xf32>,
    %c0_136 = arith.constant 0 : index
    %c2_137 = arith.constant 2 : index
    %c0_138 = arith.constant 0 : index
    %c0_139 = arith.constant 0 : index
    %c0_140 = arith.constant 0 : index
    %65 = vector.load %arg2[%c0_136, %c2_137, %c0_138, %c0_139, %c0_140] : memref<1x4x4x16x90xbf16, #tpu.memory_space<vmem>>, vector<1x1x1x16x72xbf16>
    %66 = vector.shape_cast %65 : vector<1x1x1x16x72xbf16> to vector<16x72xbf16>
    %c0_141 = arith.constant 0 : index
    %c2_142 = arith.constant 2 : index
    %c1_143 = arith.constant 1 : index
    %c0_144 = arith.constant 0 : index
    %c0_145 = arith.constant 0 : index
    %67 = vector.load %arg2[%c0_141, %c2_142, %c1_143, %c0_144, %c0_145] : memref<1x4x4x16x90xbf16, #tpu.memory_space<vmem>>, vector<1x1x1x16x72xbf16>
    %68 = vector.shape_cast %67 : vector<1x1x1x16x72xbf16> to vector<16x72xbf16>
    %c0_146 = arith.constant 0 : index
    %c2_147 = arith.constant 2 : index
    %c0_148 = arith.constant 0 : index
    %c0_149 = arith.constant 0 : index
    %c1_150 = arith.constant 1 : index
    %69 = vector.load %arg2[%c0_146, %c2_147, %c0_148, %c0_149, %c1_150] : memref<1x4x4x16x90xbf16, #tpu.memory_space<vmem>>, vector<1x1x1x16x72xbf16>
    %70 = vector.shape_cast %69 : vector<1x1x1x16x72xbf16> to vector<16x72xbf16>
    %c0_151 = arith.constant 0 : index
    %c2_152 = arith.constant 2 : index
    %c2_153 = arith.constant 2 : index
    %c0_154 = arith.constant 0 : index
    %c0_155 = arith.constant 0 : index
    %71 = vector.load %arg2[%c0_151, %c2_152, %c2_153, %c0_154, %c0_155] : memref<1x4x4x16x90xbf16, #tpu.memory_space<vmem>>, vector<1x1x1x16x72xbf16>
    %72 = vector.shape_cast %71 : vector<1x1x1x16x72xbf16> to vector<16x72xbf16>
    %c0_156 = arith.constant 0 : index
    %c2_157 = arith.constant 2 : index
    %c3_158 = arith.constant 3 : index
    %c0_159 = arith.constant 0 : index
    %c0_160 = arith.constant 0 : index
    %73 = vector.load %arg2[%c0_156, %c2_157, %c3_158, %c0_159, %c0_160] : memref<1x4x4x16x90xbf16, #tpu.memory_space<vmem>>, vector<1x1x1x16x72xbf16>
    %74 = vector.shape_cast %73 : vector<1x1x1x16x72xbf16> to vector<16x72xbf16>
    %c0_161 = arith.constant 0 : index
    %c2_162 = arith.constant 2 : index
    %c2_163 = arith.constant 2 : index
    %c0_164 = arith.constant 0 : index
    %c1_165 = arith.constant 1 : index
    %75 = vector.load %arg2[%c0_161, %c2_162, %c2_163, %c0_164, %c1_165] : memref<1x4x4x16x90xbf16, #tpu.memory_space<vmem>>, vector<1x1x1x16x72xbf16>
    %76 = vector.shape_cast %75 : vector<1x1x1x16x72xbf16> to vector<16x72xbf16>
    %c0_166 = arith.constant 0 : index
    %c2_167 = arith.constant 2 : index
    %c0_168 = arith.constant 0 : index
    %c0_169 = arith.constant 0 : index
    %c9_170 = arith.constant 9 : index
    %77 = vector.load %arg2[%c0_166, %c2_167, %c0_168, %c0_169, %c9_170] : memref<1x4x4x16x90xbf16, #tpu.memory_space<vmem>>, vector<1x1x1x16x72xbf16>
    %78 = vector.shape_cast %77 : vector<1x1x1x16x72xbf16> to vector<16x72xbf16>
    %c0_171 = arith.constant 0 : index
    %c2_172 = arith.constant 2 : index
    %c1_173 = arith.constant 1 : index
    %c0_174 = arith.constant 0 : index
    %c9_175 = arith.constant 9 : index
    %79 = vector.load %arg2[%c0_171, %c2_172, %c1_173, %c0_174, %c9_175] : memref<1x4x4x16x90xbf16, #tpu.memory_space<vmem>>, vector<1x1x1x16x72xbf16>
    %80 = vector.shape_cast %79 : vector<1x1x1x16x72xbf16> to vector<16x72xbf16>
    %c0_176 = arith.constant 0 : index
    %c2_177 = arith.constant 2 : index
    %c0_178 = arith.constant 0 : index
    %c0_179 = arith.constant 0 : index
    %c10_180 = arith.constant 10 : index
    %81 = vector.load %arg2[%c0_176, %c2_177, %c0_178, %c0_179, %c10_180] : memref<1x4x4x16x90xbf16, #tpu.memory_space<vmem>>, vector<1x1x1x16x72xbf16>
    %82 = vector.shape_cast %81 : vector<1x1x1x16x72xbf16> to vector<16x72xbf16>
    %c0_181 = arith.constant 0 : index
    %c3_182 = arith.constant 3 : index
    %c0_183 = arith.constant 0 : index
    %c0_184 = arith.constant 0 : index
    %c0_185 = arith.constant 0 : index
    %83 = vector.load %arg2[%c0_181, %c3_182, %c0_183, %c0_184, %c0_185] : memref<1x4x4x16x90xbf16, #tpu.memory_space<vmem>>, vector<1x1x1x16x72xbf16>
    %84 = vector.shape_cast %83 : vector<1x1x1x16x72xbf16> to vector<16x72xbf16>
    %c0_186 = arith.constant 0 : index
    %c3_187 = arith.constant 3 : index
    %c1_188 = arith.constant 1 : index
    %c0_189 = arith.constant 0 : index
    %c0_190 = arith.constant 0 : index
    %85 = vector.load %arg2[%c0_186, %c3_187, %c1_188, %c0_189, %c0_190] : memref<1x4x4x16x90xbf16, #tpu.memory_space<vmem>>, vector<1x1x1x16x72xbf16>
    %86 = vector.shape_cast %85 : vector<1x1x1x16x72xbf16> to vector<16x72xbf16>
    %c0_191 = arith.constant 0 : index
    %c3_192 = arith.constant 3 : index
    %c0_193 = arith.constant 0 : index
    %c0_194 = arith.constant 0 : index
    %c1_195 = arith.constant 1 : index
    %87 = vector.load %arg2[%c0_191, %c3_192, %c0_193, %c0_194, %c1_195] : memref<1x4x4x16x90xbf16, #tpu.memory_space<vmem>>, vector<1x1x1x16x72xbf16>
    %88 = vector.shape_cast %87 : vector<1x1x1x16x72xbf16> to vector<16x72xbf16>
    %c0_196 = arith.constant 0 : index
    %c3_197 = arith.constant 3 : index
    %c2_198 = arith.constant 2 : index
    %c0_199 = arith.constant 0 : index
    %c0_200 = arith.constant 0 : index
    %89 = vector.load %arg2[%c0_196, %c3_197, %c2_198, %c0_199, %c0_200] : memref<1x4x4x16x90xbf16, #tpu.memory_space<vmem>>, vector<1x1x1x16x72xbf16>
    %90 = vector.shape_cast %89 : vector<1x1x1x16x72xbf16> to vector<16x72xbf16>
    %c0_201 = arith.constant 0 : index
    %c3_202 = arith.constant 3 : index
    %c3_203 = arith.constant 3 : index
    %c0_204 = arith.constant 0 : index
    %c0_205 = arith.constant 0 : index
    %91 = vector.load %arg2[%c0_201, %c3_202, %c3_203, %c0_204, %c0_205] : memref<1x4x4x16x90xbf16, #tpu.memory_space<vmem>>, vector<1x1x1x16x72xbf16>
    %92 = vector.shape_cast %91 : vector<1x1x1x16x72xbf16> to vector<16x72xbf16>
    %c0_206 = arith.constant 0 : index
    %c3_207 = arith.constant 3 : index
    %c2_208 = arith.constant 2 : index
    %c0_209 = arith.constant 0 : index
    %c1_210 = arith.constant 1 : index
    %93 = vector.load %arg2[%c0_206, %c3_207, %c2_208, %c0_209, %c1_210] : memref<1x4x4x16x90xbf16, #tpu.memory_space<vmem>>, vector<1x1x1x16x72xbf16>
    %94 = vector.shape_cast %93 : vector<1x1x1x16x72xbf16> to vector<16x72xbf16>
    %c0_211 = arith.constant 0 : index
    %c3_212 = arith.constant 3 : index
    %c0_213 = arith.constant 0 : index
    %c0_214 = arith.constant 0 : index
    %c9_215 = arith.constant 9 : index
    %95 = vector.load %arg2[%c0_211, %c3_212, %c0_213, %c0_214, %c9_215] : memref<1x4x4x16x90xbf16, #tpu.memory_space<vmem>>, vector<1x1x1x16x72xbf16>
    %96 = vector.shape_cast %95 : vector<1x1x1x16x72xbf16> to vector<16x72xbf16>
    %c0_216 = arith.constant 0 : index
    %c3_217 = arith.constant 3 : index
    %c1_218 = arith.constant 1 : index
    %c0_219 = arith.constant 0 : index
    %c9_220 = arith.constant 9 : index
    %97 = vector.load %arg2[%c0_216, %c3_217, %c1_218, %c0_219, %c9_220] : memref<1x4x4x16x90xbf16, #tpu.memory_space<vmem>>, vector<1x1x1x16x72xbf16>
    %98 = vector.shape_cast %97 : vector<1x1x1x16x72xbf16> to vector<16x72xbf16>
    %c0_221 = arith.constant 0 : index
    %c3_222 = arith.constant 3 : index
    %c0_223 = arith.constant 0 : index
    %c0_224 = arith.constant 0 : index
    %c10_225 = arith.constant 10 : index
    %99 = vector.load %arg2[%c0_221, %c3_222, %c0_223, %c0_224, %c10_225] : memref<1x4x4x16x90xbf16, #tpu.memory_space<vmem>>, vector<1x1x1x16x72xbf16>
    %100 = vector.shape_cast %99 : vector<1x1x1x16x72xbf16> to vector<16x72xbf16>
    %c0_226 = arith.constant 0 : index
    %c0_227 = arith.constant 0 : index
    %c0_228 = arith.constant 0 : index
    %c0_229 = arith.constant 0 : index
    %c0_230 = arith.constant 0 : index
    %101 = vector.load %arg3[%c0_226, %c0_227, %c0_228, %c0_229, %c0_230] : memref<1x1x4x16x90xbf16, #tpu.memory_space<vmem>>, vector<1x1x1x16x72xbf16>
    %102 = vector.shape_cast %101 : vector<1x1x1x16x72xbf16> to vector<16x72xbf16>
    %c0_231 = arith.constant 0 : index
    %c0_232 = arith.constant 0 : index
    %c1_233 = arith.constant 1 : index
    %c0_234 = arith.constant 0 : index
    %c0_235 = arith.constant 0 : index
    %103 = vector.load %arg3[%c0_231, %c0_232, %c1_233, %c0_234, %c0_235] : memref<1x1x4x16x90xbf16, #tpu.memory_space<vmem>>, vector<1x1x1x16x72xbf16>
    %104 = vector.shape_cast %103 : vector<1x1x1x16x72xbf16> to vector<16x72xbf16>
    %c0_236 = arith.constant 0 : index
    %c0_237 = arith.constant 0 : index
    %c0_238 = arith.constant 0 : index
    %c0_239 = arith.constant 0 : index
    %c1_240 = arith.constant 1 : index
    %105 = vector.load %arg3[%c0_236, %c0_237, %c0_238, %c0_239, %c1_240] : memref<1x1x4x16x90xbf16, #tpu.memory_space<vmem>>, vector<1x1x1x16x72xbf16>
    %106 = vector.shape_cast %105 : vector<1x1x1x16x72xbf16> to vector<16x72xbf16>
    %c0_241 = arith.constant 0 : index
    %c0_242 = arith.constant 0 : index
    %c2_243 = arith.constant 2 : index
    %c0_244 = arith.constant 0 : index
    %c0_245 = arith.constant 0 : index
    %107 = vector.load %arg3[%c0_241, %c0_242, %c2_243, %c0_244, %c0_245] : memref<1x1x4x16x90xbf16, #tpu.memory_space<vmem>>, vector<1x1x1x16x72xbf16>
    %108 = vector.shape_cast %107 : vector<1x1x1x16x72xbf16> to vector<16x72xbf16>
    %c0_246 = arith.constant 0 : index
    %c0_247 = arith.constant 0 : index
    %c3_248 = arith.constant 3 : index
    %c0_249 = arith.constant 0 : index
    %c0_250 = arith.constant 0 : index
    %109 = vector.load %arg3[%c0_246, %c0_247, %c3_248, %c0_249, %c0_250] : memref<1x1x4x16x90xbf16, #tpu.memory_space<vmem>>, vector<1x1x1x16x72xbf16>
    %110 = vector.shape_cast %109 : vector<1x1x1x16x72xbf16> to vector<16x72xbf16>
    %c0_251 = arith.constant 0 : index
    %c0_252 = arith.constant 0 : index
    %c2_253 = arith.constant 2 : index
    %c0_254 = arith.constant 0 : index
    %c1_255 = arith.constant 1 : index
    %111 = vector.load %arg3[%c0_251, %c0_252, %c2_253, %c0_254, %c1_255] : memref<1x1x4x16x90xbf16, #tpu.memory_space<vmem>>, vector<1x1x1x16x72xbf16>
    %112 = vector.shape_cast %111 : vector<1x1x1x16x72xbf16> to vector<16x72xbf16>
    %c0_256 = arith.constant 0 : index
    %c0_257 = arith.constant 0 : index
    %c0_258 = arith.constant 0 : index
    %c0_259 = arith.constant 0 : index
    %c9_260 = arith.constant 9 : index
    %113 = vector.load %arg3[%c0_256, %c0_257, %c0_258, %c0_259, %c9_260] : memref<1x1x4x16x90xbf16, #tpu.memory_space<vmem>>, vector<1x1x1x16x72xbf16>
    %114 = vector.shape_cast %113 : vector<1x1x1x16x72xbf16> to vector<16x72xbf16>
    %c0_261 = arith.constant 0 : index
    %c0_262 = arith.constant 0 : index
    %c1_263 = arith.constant 1 : index
    %c0_264 = arith.constant 0 : index
    %c9_265 = arith.constant 9 : index
    %115 = vector.load %arg3[%c0_261, %c0_262, %c1_263, %c0_264, %c9_265] : memref<1x1x4x16x90xbf16, #tpu.memory_space<vmem>>, vector<1x1x1x16x72xbf16>
    %116 = vector.shape_cast %115 : vector<1x1x1x16x72xbf16> to vector<16x72xbf16>
    %c0_266 = arith.constant 0 : index
    %c0_267 = arith.constant 0 : index
    %c0_268 = arith.constant 0 : index
    %c0_269 = arith.constant 0 : index
    %c10_270 = arith.constant 10 : index
    %117 = vector.load %arg3[%c0_266, %c0_267, %c0_268, %c0_269, %c10_270] : memref<1x1x4x16x90xbf16, #tpu.memory_space<vmem>>, vector<1x1x1x16x72xbf16>
    %118 = vector.shape_cast %117 : vector<1x1x1x16x72xbf16> to vector<16x72xbf16>
    %119 = tpu.concatenate %66, %68, %70, %72, %74, %76, %78, %80, %82, %84, %86, %88, %90, %92, %94, %96 in 0 : vector<16x72xbf16>, vector<16x72xbf16>, vector<16x72xbf16>, vector<16x72xbf16>, vector<16x72xbf16>, vector<16x72xbf16>, vector<16x72xbf16>, vector<16x72xbf16>, vector<16x72xbf16>, vector<16x72xbf16>, vector<16x72xbf16>, vector<16x72xbf16>, vector<16x72xbf16>, vector<16x72xbf16>, vector<16x72xbf16>, vector<16x72xbf16> -> vector<256x72xbf16>
    %120 = tpu.concatenate %98, %100, %102, %104, %106, %108, %110, %112, %114, %116, %118 in 0 : vector<16x72xbf16>, vector<16x72xbf16>, vector<16x72xbf16>, vector<16x72xbf16>, vector<16x72xbf16>, vector<16x72xbf16>, vector<16x72xbf16>, vector<16x72xbf16>, vector<16x72xbf16>, vector<16x72xbf16>, vector<16x72xbf16> -> vector<176x72xbf16>
    %121 = tpu.concatenate %119, %120 in 0 : vector<256x72xbf16>, vector<176x72xbf16> -> vector<432x72xbf16>
    %cst_271 = arith.constant dense<0.000000e+00> : vector<32x72xf32>
    %122 = tpu.matmul %0, %121, %cst_271 {dimension_numbers = #tpu.dot_dimension_numbers<[1], [0], [0], [1], [0, 0, 1, 1], [], []>} : vector<32x432xbf16>, vector<432x72xbf16>, vector<32x72xf32> -> vector<32x72xf32>
    %123 = vector.broadcast %1 : vector<32x1xf32> to vector<32x72xf32>
    %124 = arith.addf %122, %123 : vector<32x72xf32>
    %c0_272 = arith.constant 0 : index
    %c0_273 = arith.constant 0 : index
    %c128 = arith.constant 128 : index
    %125 = vector.load %arg6[%c0_272, %c0_273, %c128] : memref<1x32x256xf32, #tpu.memory_space<vmem>>, vector<1x32x72xf32>
    %126 = vector.shape_cast %125 : vector<1x32x72xf32> to vector<32x72xf32>
    %127 = vector.shape_cast %124 : vector<32x72xf32> to vector<1x32x72xf32>
    tpu.vector_store %arg6[%c0_272, %c0_273, %c128], %127 {strides = array<i32>} : memref<1x32x256xf32, #tpu.memory_space<vmem>>, vector<1x32x72xf32>,
    return
  }
  func.func @transform_0(%arg0: i32, %arg1: i32) -> (i32, i32, i32, i32, i32) {
    %c0_i32 = arith.constant 0 : i32
    %c0_i32_0 = arith.constant 0 : i32
    %c0_i32_1 = arith.constant 0 : i32
    %c0_i32_2 = arith.constant 0 : i32
    return %arg0, %arg1, %c0_i32, %c0_i32_0, %c0_i32_1 : i32, i32, i32, i32, i32
  }
  func.func @transform_1(%arg0: i32, %arg1: i32) -> (i32, i32, i32, i32, i32) {
    %c1_i32 = arith.constant 1 : i32
    %0 = arith.addi %arg1, %c1_i32 : i32
    %c4_i32 = arith.constant 4 : i32
    %1 = arith.muli %c4_i32, %0 : i32
    %c0_i32 = arith.constant 0 : i32
    %c0_i32_0 = arith.constant 0 : i32
    %c0_i32_1 = arith.constant 0 : i32
    %c0_i32_2 = arith.constant 0 : i32
    return %arg0, %1, %c0_i32, %c0_i32_0, %c0_i32_1 : i32, i32, i32, i32, i32
  }
  func.func @transform_2(%arg0: i32, %arg1: i32) -> (i32, i32) {
    %c0_i32 = arith.constant 0 : i32
    %c0_i32_0 = arith.constant 0 : i32
    %c0_i32_1 = arith.constant 0 : i32
    return %c0_i32, %c0_i32_0 : i32, i32
  }
  func.func @transform_3(%arg0: i32, %arg1: i32) -> (i32, i32) {
    %c0_i32 = arith.constant 0 : i32
    %c0_i32_0 = arith.constant 0 : i32
    %c0_i32_1 = arith.constant 0 : i32
    return %c0_i32, %c0_i32_0 : i32, i32
  }
  func.func @transform_4(%arg0: i32, %arg1: i32) -> (i32, i32, i32) {
    %c0_i32 = arith.constant 0 : i32
    %c0_i32_0 = arith.constant 0 : i32
    return %arg0, %c0_i32, %arg1 : i32, i32, i32
  }
}

</mosaic_0001>

<llo_original>
// kernel: en_down.1
$region0: #{en_down.1}
  #allocation0 [shape = 'u32[]', space=smem, size = 0x4, offset = 0x4, fixed_abs, tag = 'smem constant byte address 0x4 - core index']
  #allocation1 [shape = 'u32[144,128]{1,0:T(1,128)}', space=vmem, size = 0x12000, scoped, tag = 'internal scratch']
  %s0 = inlined_call_operand.vmem [shape: bf16[2,17,4,16,90], index: 0, kind: input, shape index: {}, may-alias: {0,1}]
  %s1 = inlined_call_operand.vmem [shape: bf16[2,17,4,16,90], index: 1, kind: input, shape index: {}, may-alias: {0,1}]
  %s2 = inlined_call_operand.vmem [shape: bf16[32,432], index: 2, kind: input, shape index: {}]
  %s3 = inlined_call_operand.vmem [shape: f32[32,1], index: 3, kind: input, shape index: {}]
  %s4 = inlined_call_operand.vmem [shape: f32[2,32,1024], index: 4, kind: output, shape index: {}]
  %s5 = sld [smem:[#allocation0]]
  $region68: #{en_down.1} parent=0
    _
  %s7 = ssub.s32 1, %s5
  %s8 = scalar_select 0, %s7, %s5
  $region1: #{en_down.1} parent=0
    #allocation2 [shape = 'u8[65536]{0}', space=vmem, size = 0x10000, scoped, tag = 'output window, operand 0']
    loop: start=0, step=1, limit=10
    $region2: #{en_down.1} parent=1 // loop_pre_header
      _
    $region3: #{en_down.1} parent=1 // loop_header
      %s10 = sphi 0, %s14
      %p11 = scmp.ge.s32.totalorder %s10, 10
      %s17 = sphi 0, %s29
      %s18 = sphi 0, %s25
      %s19 = sphi 0, %s17
      %s20 = sphi 0, %s18
      %s21 = sphi 0, %s19
      %s22 = sphi 0, %s20
      %s34 = sphi 0, %s36
      %s37 = sphi 0, %s34
      %s38 = sphi 0, %s37
      %s54 = sphi 0, %s38
      %s66 = sphi 0, %s68
      %s69 = sphi 0, %s66
      %s70 = sphi 0, %s69
      %s86 = sphi 0, %s70
      %s90 = sphi 0, %s90
      %s92 = sphi 0, %s90
      %s93 = sphi 0, %s92
      %s107 = sphi 0, %s93
      %s111 = sphi 0, %s111
      %s113 = sphi 0, %s111
      %s114 = sphi 0, %s113
      %s128 = sphi 0, %s114
      %s136 = sphi 0, %s138
      %s139 = sphi 0, %s136
      %s140 = sphi 0, %s139
      %s156 = sphi 0, %s140
    $region4: #{en_down.1} parent=1 // loop_header_branch
      %13 = sbr.rel (%p11) target = $region8
    $region5: #{en_down.1} parent=1 // loop_body
      %s15 = ssub.s32 %s10, 1
      %s16 = ssub.s32 %s10, 2
      %s23 = sadd.s32 1, %s18
      %p24 = scmp.ge.s32.totalorder %s23, 4
      %s25 = scalar_select %p24, 0, %s23
      %s26 = sadd.s32 1, %s17
      %s27 = scalar_select %p24, %s26, %s17
      %p28 = scmp.ge.s32.totalorder %s27, 2
      %s29 = scalar_select %p28, 0, %s27
      %s30 = ssub.s32 %s17, %s29
      %s31 = ssub.s32 %s18, %s25
      %s32 = sor.u32 %s30, %s31
      %p33 = scmp.eq.s32.totalorder %s32, 0
      %s35 = sadd.s32 %s34, 1
      %s36 = scalar_select %p33, %s34, %s35
      %p39 = pneg %p33
      %p40 = scmp.eq.s32.totalorder %s10, 7
      %p41 = por %p39, %p40
      %p42 = scmp.ne.s32.totalorder %s34, %s37
      %p43 = scmp.eq.s32.totalorder %s10, 0
      %p44 = por %p42, %p43
      %p45 = scmp.ne.s32.totalorder %s34, %s37
      %p46 = scmp.eq.s32.totalorder %s15, 7
      %p47 = por %p45, %p46
      %p48 = scmp.ne.s32.totalorder %s37, %s38
      %p49 = scmp.eq.s32.totalorder %s15, 0
      %p50 = por %p48, %p49
      %p51 = scmp.ne.s32.totalorder %s37, %s38
      %p52 = scmp.eq.s32.totalorder %s16, 7
      %p53 = por %p51, %p52
      %p55 = scmp.ne.s32.totalorder %s38, %s54
      %p56 = scmp.eq.s32.totalorder %s16, 0
      %p57 = por %p55, %p56
      %s58 = sadd.s32 %s18, 1
      %s59 = smul.u32 %s58, 4
      %s60 = sadd.s32 %s25, 1
      %s61 = smul.u32 %s60, 4
      %s62 = ssub.s32 %s17, %s29
      %s63 = ssub.s32 %s59, %s61
      %s64 = sor.u32 %s62, %s63
      %p65 = scmp.eq.s32.totalorder %s64, 0
      %s67 = sadd.s32 %s66, 1
      %s68 = scalar_select %p65, %s66, %s67
      %p71 = pneg %p65
      %p72 = scmp.eq.s32.totalorder %s10, 7
      %p73 = por %p71, %p72
      %p74 = scmp.ne.s32.totalorder %s66, %s69
      %p75 = scmp.eq.s32.totalorder %s10, 0
      %p76 = por %p74, %p75
      %p77 = scmp.ne.s32.totalorder %s66, %s69
      %p78 = scmp.eq.s32.totalorder %s15, 7
      %p79 = por %p77, %p78
      %p80 = scmp.ne.s32.totalorder %s69, %s70
      %p81 = scmp.eq.s32.totalorder %s15, 0
      %p82 = por %p80, %p81
      %p83 = scmp.ne.s32.totalorder %s69, %s70
      %p84 = scmp.eq.s32.totalorder %s16, 7
      %p85 = por %p83, %p84
      %p87 = scmp.ne.s32.totalorder %s70, %s86
      %p88 = scmp.eq.s32.totalorder %s16, 0
      %p89 = por %p87, %p88
      %s91 = sadd.s32 %s90, 1
      %p94 = scmp.eq.s32.totalorder %s10, 7
      %p95 = scmp.ne.s32.totalorder %s90, %s92
      %p96 = scmp.eq.s32.totalorder %s10, 0
      %p97 = por %p95, %p96
      %p98 = scmp.ne.s32.totalorder %s90, %s92
      %p99 = scmp.eq.s32.totalorder %s15, 7
      %p100 = por %p98, %p99
      %p101 = scmp.ne.s32.totalorder %s92, %s93
      %p102 = scmp.eq.s32.totalorder %s15, 0
      %p103 = por %p101, %p102
      %p104 = scmp.ne.s32.totalorder %s92, %s93
      %p105 = scmp.eq.s32.totalorder %s16, 7
      %p106 = por %p104, %p105
      %p108 = scmp.ne.s32.totalorder %s93, %s107
      %p109 = scmp.eq.s32.totalorder %s16, 0
      %p110 = por %p108, %p109
      %s112 = sadd.s32 %s111, 1
      %p115 = scmp.eq.s32.totalorder %s10, 7
      %p116 = scmp.ne.s32.totalorder %s111, %s113
      %p117 = scmp.eq.s32.totalorder %s10, 0
      %p118 = por %p116, %p117
      %p119 = scmp.ne.s32.totalorder %s111, %s113
      %p120 = scmp.eq.s32.totalorder %s15, 7
      %p121 = por %p119, %p120
      %p122 = scmp.ne.s32.totalorder %s113, %s114
      %p123 = scmp.eq.s32.totalorder %s15, 0
      %p124 = por %p122, %p123
      %p125 = scmp.ne.s32.totalorder %s113, %s114
      %p126 = scmp.eq.s32.totalorder %s16, 7
      %p127 = por %p125, %p126
      %p129 = scmp.ne.s32.totalorder %s114, %s128
      %p130 = scmp.eq.s32.totalorder %s16, 0
      %p131 = por %p129, %p130
      %s132 = ssub.s32 %s17, %s29
      %s133 = ssub.s32 %s18, %s25
      %s134 = sor.u32 %s132, %s133
      %p135 = scmp.eq.s32.totalorder %s134, 0
      %s137 = sadd.s32 %s136, 1
      %s138 = scalar_select %p135, %s136, %s137
      %p141 = pneg %p135
      %p142 = scmp.eq.s32.totalorder %s10, 7
      %p143 = por %p141, %p142
      %p144 = scmp.ne.s32.totalorder %s136, %s139
      %p145 = scmp.eq.s32.totalorder %s10, 0
      %p146 = por %p144, %p145
      %p147 = scmp.ne.s32.totalorder %s136, %s139
      %p148 = scmp.eq.s32.totalorder %s15, 7
      %p149 = por %p147, %p148
      %p150 = scmp.ne.s32.totalorder %s139, %s140
      %p151 = scmp.eq.s32.totalorder %s15, 0
      %p152 = por %p150, %p151
      %p153 = scmp.ne.s32.totalorder %s139, %s140
      %p154 = scmp.eq.s32.totalorder %s16, 7
      %p155 = por %p153, %p154
      %p157 = scmp.ne.s32.totalorder %s140, %s156
      %p158 = scmp.eq.s32.totalorder %s16, 0
      %p159 = por %p157, %p158
      %p160 = scmp.le.s32.totalorder 1, %s10
      %p161 = scmp.lt.s32.totalorder %s10, 9
      %p162 = pnand %p160, %p161
      %p163 = pneg %p162
      // Predicated region
      $region9: #{en_down.1} parent=5 // pred_check
        _
      $region10: #{en_down.1} parent=5 // pred_check_branch
        %165 = sbr.rel (%p162) target = $region12
      $region11: #{en_down.1} parent=5 // pred_region
        %s166 = ssub.s32 %s10, 1
        // Predicated region
        $region13: #{en_down.1} parent=11 // pred_check
          %p167 = pneg %p103
        $region14: #{en_down.1} parent=11 // pred_check_branch
          %169 = sbr.rel (%p167) target = $region16
        $region15: #{en_down.1} parent=11 // pred_region
          _
        $region16: #{en_down.1} parent=11 // pred_fallthru
          _
        // Predicated region
        $region17: #{en_down.1} parent=11 // pred_check
          %p170 = pneg %p124
        $region18: #{en_down.1} parent=11 // pred_check_branch
          %172 = sbr.rel (%p170) target = $region20
        $region19: #{en_down.1} parent=11 // pred_region
          _
        $region20: #{en_down.1} parent=11 // pred_fallthru
          _
      $region12: #{en_down.1} parent=5 // pred_fallthru
        _
      %p173 = scmp.lt.s32.totalorder %s10, 8
      // Predicated region
      $region21: #{en_down.1} parent=5 // pred_check
        %p174 = pneg %p173
      $region22: #{en_down.1} parent=5 // pred_check_branch
        %176 = sbr.rel (%p174) target = $region24
      $region23: #{en_down.1} parent=5 // pred_region
        // Predicated region
        $region25: #{en_down.1} parent=23 // pred_check
          %p177 = pneg %p44
        $region26: #{en_down.1} parent=23 // pred_check_branch
          %179 = sbr.rel (%p177) target = $region28
        $region27: #{en_down.1} parent=23 // pred_region
          %s180 = smul.u32 4, %s18
          %s181 = ssub.s32 17, %s180
          %p182 = scmp.lt.s32.totalorder %s181, 4
          %s183 = scalar_select %p182, %s181, 4
          %s184 = smul.u32 64, %s183
          %s185 = smul.u32 %s184, 4
          %s186 = smul.u32 %s185, 2
          %p187 = scmp.lt.s32.totalorder %s17, 1
          %s188 = scalar_select %p187, %s17, 1
          %p189 = scmp.lt.s32.totalorder %s180, 16
          %s190 = scalar_select %p189, %s180, 16
          %s191 = smul.addr %s190, 8
          %s192 = smul.addr %s188, 136
          %s193 = sadd.s32 %s191, %s192
          %s194 = smul.addr %s193, 4
          %s195 = scalar_lea.vmem %s0, %s194
          %s196 = smul.u32 4, %s18
          %s197 = ssub.s32 17, %s196
          %p198 = scmp.lt.s32.totalorder %s197, 4
          %s199 = scalar_select %p198, %s197, 4
          %s200 = smul.u32 64, %s199
          %s201 = smul.u32 %s200, 4
          %s202 = smul.u32 %s201, 2
        $region28: #{en_down.1} parent=23 // pred_fallthru
          _
        // Predicated region
        $region29: #{en_down.1} parent=23 // pred_check
          %p203 = pneg %p76
        $region30: #{en_down.1} parent=23 // pred_check_branch
          %205 = sbr.rel (%p203) target = $region32
        $region31: #{en_down.1} parent=23 // pred_region
          %s206 = sadd.s32 %s18, 1
          %s207 = smul.u32 %s206, 4
          %p208 = scmp.lt.s32.totalorder %s17, 1
          %s209 = scalar_select %p208, %s17, 1
          %p210 = scmp.lt.s32.totalorder %s207, 16
          %s211 = scalar_select %p210, %s207, 16
          %s212 = smul.addr %s211, 8
          %s213 = smul.addr %s209, 136
          %s214 = sadd.s32 %s212, %s213
          %s215 = smul.addr %s214, 4
          %s216 = scalar_lea.vmem %s1, %s215
          %s217 = sadd.s32 %s18, 1
          %s218 = smul.u32 %s217, 4
        $region32: #{en_down.1} parent=23 // pred_fallthru
          _
      $region24: #{en_down.1} parent=5 // pred_fallthru
        _
      %p219 = scmp.le.s32.totalorder 1, %s10
      %p220 = scmp.lt.s32.totalorder %s10, 9
      %p221 = pnand %p219, %p220
      %p222 = pneg %p221
      // Predicated region
      $region33: #{en_down.1} parent=5 // pred_check
        _
      $region34: #{en_down.1} parent=5 // pred_check_branch
        %224 = sbr.rel (%p221) target = $region36
      $region35: #{en_down.1} parent=5 // pred_region
        %s225 = ssub.s32 %s10, 1
        %s226 = smul.u32 4, %s20
        %s227 = ssub.s32 17, %s226
        %p228 = scmp.lt.s32.totalorder %s227, 4
        %s229 = scalar_select %p228, %s227, 4
        %s230 = smul.u32 64, %s229
        %s231 = smul.u32 %s230, 4
        %s232 = smul.u32 %s231, 2
        %p233 = scmp.lt.s32.totalorder %s19, 1
        %s234 = scalar_select %p233, %s19, 1
        %p235 = scmp.lt.s32.totalorder %s226, 16
        %s236 = scalar_select %p235, %s226, 16
        %s237 = smul.addr %s236, 8
        %s238 = smul.addr %s234, 136
        %s239 = sadd.s32 %s237, %s238
        %s240 = smul.addr %s239, 4
        %s241 = scalar_lea.vmem %s0, %s240
        %p242 = pneg %p50
        %p243 = pneg %p47
        %s244 = sadd.s32 %s20, 1
        %s245 = smul.u32 %s244, 4
        %p246 = scmp.lt.s32.totalorder %s19, 1
        %s247 = scalar_select %p246, %s19, 1
        %p248 = scmp.lt.s32.totalorder %s245, 16
        %s249 = scalar_select %p248, %s245, 16
        %s250 = smul.addr %s249, 8
        %s251 = smul.addr %s247, 136
        %s252 = sadd.s32 %s250, %s251
        %s253 = smul.addr %s252, 4
        %s254 = scalar_lea.vmem %s1, %s253
        %p255 = pneg %p82
        %p256 = pneg %p79
        %p257 = pneg %p103
        %p258 = pneg %p100
        %p259 = pneg %p124
        %p260 = pneg %p121
        %p261 = pneg %p152
        %p262 = pneg %p149
        %s263 = sand.u32 %s139, 1
        %s264 = sand.u32 %s139, 1
        %s265 = smul.addr %s264, 64
        %s266 = scalar_lea.vmem [#allocation2], %s265
        %s267 = smul.u32 4, %s20
        %s268 = ssub.s32 17, %s267
        %p269 = scmp.lt.s32.totalorder %s268, 4
        %s270 = scalar_select %p269, %s268, 4
        %s271 = smul.u32 64, %s270
        %s272 = smul.u32 %s271, 4
        %s273 = smul.u32 %s272, 2
        %p274 = scmp.lt.s32.totalorder %s19, 1
        %s275 = scalar_select %p274, %s19, 1
        %p276 = scmp.lt.s32.totalorder %s267, 16
        %s277 = scalar_select %p276, %s267, 16
        %s278 = smul.addr %s277, 8
        %s279 = smul.addr %s275, 136
        %s280 = sadd.s32 %s278, %s279
        %s281 = smul.addr %s280, 4
        %s282 = scalar_lea.vmem %s0, %s281
        %s283 = smul.u32 4, %s20
        %s284 = ssub.s32 17, %s283
        %p285 = scmp.lt.s32.totalorder %s284, 4
        %s286 = scalar_select %p285, %s284, 4
        %s287 = smul.u32 64, %s286
        %s288 = smul.u32 %s287, 4
        %s289 = smul.u32 %s288, 2
        %s290 = sadd.s32 %s20, 1
        %s291 = smul.u32 %s290, 4
        %p292 = scmp.lt.s32.totalorder %s19, 1
        %s293 = scalar_select %p292, %s19, 1
        %p294 = scmp.lt.s32.totalorder %s291, 16
        %s295 = scalar_select %p294, %s291, 16
        %s296 = smul.addr %s295, 8
        %s297 = smul.addr %s293, 136
        %s298 = sadd.s32 %s296, %s297
        %s299 = smul.addr %s298, 4
        %s300 = scalar_lea.vmem %s1, %s299
        %s301 = sadd.s32 %s20, 1
        %s302 = smul.u32 %s301, 4
        %s303 = smul.u32 2, %s20
        %v305 = vld [vmem:[%s2] sm:$0xff]
        %v306 = vld [vmem:[%s2 + $0x8] sm:$0xff]
        %v307 = vld [vmem:[%s2 + $0x10] sm:$0xff]
        %v308 = vld [vmem:[%s2 + $0x18] sm:$0xff]
        %v309 = vld [vmem:[%s2 + $0x20] sm:$0xff]
        %v310 = vld [vmem:[%s2 + $0x28] sm:$0xff]
        %v311 = vld [vmem:[%s2 + $0x30] sm:$0xff]
        %v312 = vld [vmem:[%s2 + $0x38] sm:$0xff]
        %v313 = vld [vmem:[%s3] sm:$0xff]
        %v314 = vld [vmem:[%s3 + $0x8] sm:$0xff]
        %v315 = vld [vmem:[%s3 + $0x10] sm:$0xff]
        %v316 = vld [vmem:[%s3 + $0x18] sm:$0xff]
        %v317 = vld [vmem:[%s282] sm:$0xf]
        %v318 = vld [vmem:[%s282 + $0x4] sm:$0xf]
        %s319 = scalar_lea.vmem %s282, 8
        %v320 = vld [vmem:[%s319] sm:$0xf]
        %v321 = vld [vmem:[%s319 + $0x4] sm:$0xf]
        %s322 = scalar_lea.vmem %s282, 16
        %v323 = vld [vmem:[%s322] sm:$0xf]
        %v324 = vld [vmem:[%s322 + $0x4] sm:$0xf]
        %s325 = scalar_lea.vmem %s282, 24
        %v326 = vld [vmem:[%s325] sm:$0xf]
        %v327 = vld [vmem:[%s325 + $0x4] sm:$0xf]
        %s328 = scalar_lea.vmem %s282, 32
        %v329 = vld [vmem:[%s328] sm:$0xf]
        %v330 = vld [vmem:[%s328 + $0x4] sm:$0xf]
        %s331 = scalar_lea.vmem %s282, 40
        %v332 = vld [vmem:[%s331] sm:$0xf]
        %v333 = vld [vmem:[%s331 + $0x4] sm:$0xf]
        %s334 = scalar_lea.vmem %s282, 48
        %v335 = vld [vmem:[%s334] sm:$0xf]
        %v336 = vld [vmem:[%s334 + $0x4] sm:$0xf]
        %s337 = scalar_lea.vmem %s282, 56
        %v338 = vld [vmem:[%s337] sm:$0xf]
        %v339 = vld [vmem:[%s337 + $0x4] sm:$0xf]
        %s340 = scalar_lea.vmem %s282, 64
        %v341 = vld [vmem:[%s340] sm:$0xf]
        %v342 = vld [vmem:[%s340 + $0x4] sm:$0xf]
        %s343 = scalar_lea.vmem %s282, 72
        %v344 = vld [vmem:[%s343] sm:$0xf]
        %v345 = vld [vmem:[%s343 + $0x4] sm:$0xf]
        %s346 = scalar_lea.vmem %s282, 80
        %v347 = vld [vmem:[%s346] sm:$0xf]
        %v348 = vld [vmem:[%s346 + $0x4] sm:$0xf]
        %s349 = scalar_lea.vmem %s282, 88
        %v350 = vld [vmem:[%s349] sm:$0xf]
        %v351 = vld [vmem:[%s349 + $0x4] sm:$0xf]
        %v354 = vunpack.c.l.b16 %v317
        %v355 = vunpack.c.l.b16 %v318
        %v356 = vpack.c.b16 %v355, %v354
        %v360 = vunpack.c.l.b16 %v320
        %v361 = vunpack.c.l.b16 %v321
        %v362 = vpack.c.b16 %v361, %v360
        %364 = vrot.lane.b32.xlu0 %v356, 127
        %v365 = vpop.permute.xlu0 %364
        %v369 = vunpack.c.l.b16 %v323
        %v370 = vunpack.c.l.b16 %v324
        %v371 = vpack.c.b16 %v370, %v369
        %v375 = vunpack.c.l.b16 %v326
        %v376 = vunpack.c.l.b16 %v327
        %v377 = vpack.c.b16 %v376, %v375
        %379 = vrot.lane.b32.xlu0 %v371, 127
        %v380 = vpop.permute.xlu0 %379
        %382 = vrot.lane.b32.xlu0 %v356, 119
        %v383 = vpop.permute.xlu0 %382
        %385 = vrot.lane.b32.xlu0 %v362, 119
        %v386 = vpop.permute.xlu0 %385
        %388 = vrot.lane.b32.xlu0 %v356, 118
        %v389 = vpop.permute.xlu0 %388
        %v393 = vunpack.c.l.b16 %v329
        %v394 = vunpack.c.l.b16 %v330
        %v395 = vpack.c.b16 %v394, %v393
        %v399 = vunpack.c.l.b16 %v332
        %v400 = vunpack.c.l.b16 %v333
        %v401 = vpack.c.b16 %v400, %v399
        %403 = vrot.lane.b32.xlu0 %v395, 127
        %v404 = vpop.permute.xlu0 %403
        %v408 = vunpack.c.l.b16 %v335
        %v409 = vunpack.c.l.b16 %v336
        %v410 = vpack.c.b16 %v409, %v408
        %v414 = vunpack.c.l.b16 %v338
        %v415 = vunpack.c.l.b16 %v339
        %v416 = vpack.c.b16 %v415, %v414
        %418 = vrot.lane.b32.xlu0 %v410, 127
        %v419 = vpop.permute.xlu0 %418
        %421 = vrot.lane.b32.xlu0 %v395, 119
        %v422 = vpop.permute.xlu0 %421
        %v426 = vunpack.c.l.b16 %v341
        %v427 = vunpack.c.l.b16 %v342
        %v428 = vpack.c.b16 %v427, %v426
        %429 = vrot.lane.b32.xlu0 %v428, 9
        %v430 = vpop.permute.xlu0 %429
        %v433 = vunpack.c.l.b16 %v344
        %v434 = vunpack.c.l.b16 %v345
        %v435 = vpack.c.b16 %v434, %v433
        %436 = vrot.lane.b32.xlu0 %v435, 9
        %v437 = vpop.permute.xlu0 %436
        %438 = vrot.lane.b32.xlu0 %v428, 8
        %v439 = vpop.permute.xlu0 %438
        %v442 = vunpack.c.l.b16 %v347
        %v443 = vunpack.c.l.b16 %v348
        %v444 = vpack.c.b16 %v443, %v442
        %445 = vrot.lane.b32.xlu0 %v444, 9
        %v446 = vpop.permute.xlu0 %445
        %v449 = vunpack.c.l.b16 %v350
        %v450 = vunpack.c.l.b16 %v351
        %v451 = vpack.c.b16 %v450, %v449
        %452 = vrot.lane.b32.xlu0 %v451, 9
        %v453 = vpop.permute.xlu0 %452
        %454 = vrot.lane.b32.xlu0 %v444, 8
        %v455 = vpop.permute.xlu0 %454
        %456 = vrot.lane.b32.xlu0 %v428, 127
        %v457 = vpop.permute.xlu0 %456
        %458 = vrot.lane.b32.xlu0 %v401, 119
        %v459 = vpop.permute.xlu0 %458
        %460 = vrot.lane.b32.xlu0 %v404, 119
        %v461 = vpop.permute.xlu0 %460
        %462 = vrot.lane.b32.xlu0 %v430, 119
        %v463 = vpop.permute.xlu0 %462
        %464 = vrot.lane.b32.xlu0 %v437, 119
        %v465 = vpop.permute.xlu0 %464
        %466 = vrot.lane.b32.xlu0 %v439, 119
        %v467 = vpop.permute.xlu0 %466
        %468 = vrot.lane.b32.xlu0 %v446, 119
        %v469 = vpop.permute.xlu0 %468
        %470 = vrot.lane.b32.xlu0 %v453, 119
        %v471 = vpop.permute.xlu0 %470
        %472 = vrot.lane.b32.xlu0 %v455, 119
        %v473 = vpop.permute.xlu0 %472
        %474 = vrot.lane.b32.xlu0 %v428, 119
        %v475 = vpop.permute.xlu0 %474
        %476 = vrot.lane.b32.xlu0 %v435, 119
        %v477 = vpop.permute.xlu0 %476
        %478 = vrot.lane.b32.xlu0 %v457, 119
        %v479 = vpop.permute.xlu0 %478
        %492 = vset.pattern.permute.xlu0 0
        %493 = vperm.xlu0 %492, %v313
        %v494 = vpop.permute.xlu0 %493
        %497 = vset.pattern.permute.xlu0 0
        %498 = vperm.xlu0 %497, %v314
        %v499 = vpop.permute.xlu0 %498
        %502 = vset.pattern.permute.xlu0 0
        %503 = vperm.xlu0 %502, %v315
        %v504 = vpop.permute.xlu0 %503
        %507 = vset.pattern.permute.xlu0 0
        %508 = vperm.xlu0 %507, %v316
        %v509 = vpop.permute.xlu0 %508
        %v519 = vunpack.c.l.b16 %v305
        %v520 = vunpack.c.h.b16 %v305
        %v521 = vunpack.c.l.b16 %v306
        %v522 = vunpack.c.h.b16 %v306
        %v523 = vunpack.c.l.b16 %v307
        %v524 = vunpack.c.h.b16 %v307
        %v525 = vunpack.c.l.b16 %v308
        %v526 = vunpack.c.h.b16 %v308
        %v527 = vunpack.c.l.b16 %v309
        %v528 = vunpack.c.h.b16 %v309
        %v529 = vunpack.c.l.b16 %v310
        %v530 = vunpack.c.h.b16 %v310
        %v531 = vunpack.c.l.b16 %v311
        %v532 = vunpack.c.h.b16 %v311
        %v533 = vunpack.c.l.b16 %v312
        %v534 = vunpack.c.h.b16 %v312
        %v535 = vpack.c.b16 %v523, %v519
        %v536 = vpack.c.b16 %v524, %v520
        %v537 = vpack.c.b16 %v525, %v521
        %v538 = vpack.c.b16 %v526, %v522
        %v539 = vpack.c.b16 %v531, %v527
        %v540 = vpack.c.b16 %v532, %v528
        %v541 = vpack.c.b16 %v533, %v529
        %v542 = vpack.c.b16 %v534, %v530
        %vm549 = vcmask 392192
        %v551 = vsel %vm549, %v538, 0
        %v554 = vsel %vm549, %v542, 0
        %556 = vmatprep.subr.bf16.mxu0 0
        %557 = vmatpush1.bf16.msra.mxu0 %v356
        %558 = vmatprep.subr.bf16.mxu0 0
        %559 = vmatpush1.bf16.msra.mxu0 %v362
        %560 = vmatprep.subr.bf16.mxu0 0
        %561 = vmatpush1.bf16.msra.mxu0 %v365
        %562 = vmatprep.subr.bf16.mxu0 0
        %563 = vmatpush1.bf16.msra.mxu0 %v371
        %564 = vmatprep.subr.bf16.mxu0 0
        %565 = vmatpush1.bf16.msra.mxu0 %v377
        %566 = vmatprep.subr.bf16.mxu0 0
        %567 = vmatpush1.bf16.msra.mxu0 %v380
        %568 = vmatprep.subr.bf16.mxu0 0
        %569 = vmatpush1.bf16.msra.mxu0 %v383
        %570 = vmatprep.subr.bf16.mxu0 0
        %571 = vmatpush1.bf16.msra.mxu0 %v386
        %572 = vmatprep.subr.bf16.mxu0 0
        %573 = vmatpush1.bf16.msra.mxu0 %v389
        %574 = vmatprep.subr.bf16.mxu0 0
        %575 = vmatpush1.bf16.msra.mxu0 %v395
        %576 = vmatprep.subr.bf16.mxu0 0
        %577 = vmatpush1.bf16.msra.mxu0 %v401
        %578 = vmatprep.subr.bf16.mxu0 0
        %579 = vmatpush1.bf16.msra.mxu0 %v404
        %580 = vmatprep.subr.bf16.mxu0 0
        %581 = vmatpush1.bf16.msra.mxu0 %v410
        %582 = vmatprep.subr.bf16.mxu0 0
        %583 = vmatpush1.bf16.msra.mxu0 %v416
        %584 = vmatprep.subr.bf16.mxu0 0
        %585 = vmatpush1.bf16.msra.mxu0 %v419
        %586 = vmatprep.subr.bf16.mxu0 0
        %587 = vmatpush1.bf16.msra.mxu0 %v422
        %588 = vmatprep.mubr.bf16.mxu0 %v536
        %589 = vmatmul.mubr.bf16.gmra.mrb[0].mxu0 %v535
        %v590 = vpop.f32.mrb[0].mxu0
        %v591 = vadd.f32 %v494, %v590
        %v592 = vpop.f32.mrb[0].mxu0
        %v593 = vpop.f32.mrb[0].mxu0
        %v594 = vadd.f32 %v499, %v593
        %v595 = vpop.f32.mrb[0].mxu0
        %596 = vmatprep.mubr.bf16.mxu0 %v540
        %597 = vmatmul.mubr.bf16.gmra.mrb[0].mxu0 %v539
        %v598 = vpop.f32.mrb[0].mxu0
        %v599 = vadd.f32 %v504, %v598
        %v600 = vpop.f32.mrb[0].mxu0
        %v601 = vpop.f32.mrb[0].mxu0
        %v602 = vadd.f32 %v509, %v601
        %v603 = vpop.f32.mrb[0].mxu0
        %604 = vdwg.mxu0
        %605 = vmatprep.subr.bf16.mxu0 0
        %606 = vmatpush1.bf16.msra.mxu0 %v459
        %607 = vmatprep.subr.bf16.mxu0 0
        %608 = vmatpush1.bf16.msra.mxu0 %v461
        %609 = vmatprep.subr.bf16.mxu0 0
        %610 = vmatpush1.bf16.msra.mxu0 %v463
        %611 = vmatprep.subr.bf16.mxu0 0
        %612 = vmatpush1.bf16.msra.mxu0 %v465
        %613 = vmatprep.subr.bf16.mxu0 0
        %614 = vmatpush1.bf16.msra.mxu0 %v467
        %615 = vmatprep.subr.bf16.mxu0 0
        %616 = vmatpush1.bf16.msra.mxu0 %v469
        %617 = vmatprep.subr.bf16.mxu0 0
        %618 = vmatpush1.bf16.msra.mxu0 %v471
        %619 = vmatprep.subr.bf16.mxu0 0
        %620 = vmatpush1.bf16.msra.mxu0 %v473
        %621 = vmatprep.subr.bf16.mxu0 0
        %622 = vmatpush1.bf16.msra.mxu0 %v475
        %623 = vmatprep.subr.bf16.mxu0 0
        %624 = vmatpush1.bf16.msra.mxu0 %v477
        %625 = vmatprep.subr.bf16.mxu0 0
        %626 = vmatpush1.bf16.msra.mxu0 %v479
        %627 = vmatprep.subr.bf16.mxu0 0
        %628 = vmatpush1.bf16.msra.mxu0 0
        %629 = vmatprep.subr.bf16.mxu0 0
        %630 = vmatpush1.bf16.msra.mxu0 0
        %631 = vmatprep.subr.bf16.mxu0 0
        %632 = vmatpush1.bf16.msra.mxu0 0
        %633 = vmatprep.subr.bf16.mxu0 0
        %634 = vmatpush1.bf16.msra.mxu0 0
        %635 = vmatprep.subr.bf16.mxu0 0
        %636 = vmatpush1.bf16.msra.mxu0 0
        %637 = vmatprep.mubr.bf16.mxu0 %v551
        %638 = vmatmul.mubr.bf16.gmra.mrb[0].mxu0 %v537
        %v639 = vpop.f32.mrb[0].mxu0
        %v640 = vadd.f32 %v591, %v639
        %v641 = vpop.f32.mrb[0].mxu0
        %v642 = vpop.f32.mrb[0].mxu0
        %v643 = vadd.f32 %v594, %v642
        %v644 = vpop.f32.mrb[0].mxu0
        %645 = vmatprep.mubr.bf16.mxu0 %v554
        %646 = vmatmul.mubr.bf16.gmra.mrb[0].mxu0 %v541
        %v647 = vpop.f32.mrb[0].mxu0
        %v648 = vadd.f32 %v599, %v647
        %v649 = vpop.f32.mrb[0].mxu0
        %v650 = vpop.f32.mrb[0].mxu0
        %v651 = vadd.f32 %v602, %v650
        %v652 = vpop.f32.mrb[0].mxu0
        %653 = vdwg.mxu0
        %vm654 = vcmask 588800
        %655 = vst.msk [vmem:[%s266] sm:$0xff] %vm654, %v640
        %656 = vst.msk [vmem:[%s266 + $0x10] sm:$0xff] %vm654, %v643
        %657 = vst.msk [vmem:[%s266 + $0x20] sm:$0xff] %vm654, %v648
        %658 = vst.msk [vmem:[%s266 + $0x30] sm:$0xff] %vm654, %v651
        %v659 = vld [vmem:[%s340] sm:$0xf]
        %v660 = vld [vmem:[%s340 + $0x4] sm:$0xf]
        %v661 = vld [vmem:[%s343] sm:$0xf]
        %v662 = vld [vmem:[%s343 + $0x4] sm:$0xf]
        %v663 = vld [vmem:[%s346] sm:$0xf]
        %v664 = vld [vmem:[%s346 + $0x4] sm:$0xf]
        %v665 = vld [vmem:[%s349] sm:$0xf]
        %v666 = vld [vmem:[%s349 + $0x4] sm:$0xf]
        %s667 = scalar_lea.vmem %s282, 96
        %v668 = vld [vmem:[%s667] sm:$0xf]
        %v669 = vld [vmem:[%s667 + $0x4] sm:$0xf]
        %s670 = scalar_lea.vmem %s282, 104
        %v671 = vld [vmem:[%s670] sm:$0xf]
        %v672 = vld [vmem:[%s670 + $0x4] sm:$0xf]
        %s673 = scalar_lea.vmem %s282, 112
        %v674 = vld [vmem:[%s673] sm:$0xf]
        %v675 = vld [vmem:[%s673 + $0x4] sm:$0xf]
        %s676 = scalar_lea.vmem %s282, 120
        %v677 = vld [vmem:[%s676] sm:$0xf]
        %v678 = vld [vmem:[%s676 + $0x4] sm:$0xf]
        %v679 = vld [vmem:[%s300] sm:$0xf]
        %v680 = vld [vmem:[%s300 + $0x4] sm:$0xf]
        %s681 = scalar_lea.vmem %s300, 8
        %v682 = vld [vmem:[%s681] sm:$0xf]
        %v683 = vld [vmem:[%s681 + $0x4] sm:$0xf]
        %s684 = scalar_lea.vmem %s300, 16
        %v685 = vld [vmem:[%s684] sm:$0xf]
        %v686 = vld [vmem:[%s684 + $0x4] sm:$0xf]
        %s687 = scalar_lea.vmem %s300, 24
        %v688 = vld [vmem:[%s687] sm:$0xf]
        %v689 = vld [vmem:[%s687 + $0x4] sm:$0xf]
        %v692 = vunpack.c.l.b16 %v659
        %v693 = vunpack.c.l.b16 %v660
        %v694 = vpack.c.b16 %v693, %v692
        %v698 = vunpack.c.l.b16 %v661
        %v699 = vunpack.c.l.b16 %v662
        %v700 = vpack.c.b16 %v699, %v698
        %702 = vrot.lane.b32.xlu0 %v694, 127
        %v703 = vpop.permute.xlu0 %702
        %v707 = vunpack.c.l.b16 %v663
        %v708 = vunpack.c.l.b16 %v664
        %v709 = vpack.c.b16 %v708, %v707
        %v713 = vunpack.c.l.b16 %v665
        %v714 = vunpack.c.l.b16 %v666
        %v715 = vpack.c.b16 %v714, %v713
        %717 = vrot.lane.b32.xlu0 %v709, 127
        %v718 = vpop.permute.xlu0 %717
        %720 = vrot.lane.b32.xlu0 %v694, 119
        %v721 = vpop.permute.xlu0 %720
        %723 = vrot.lane.b32.xlu0 %v700, 119
        %v724 = vpop.permute.xlu0 %723
        %726 = vrot.lane.b32.xlu0 %v694, 118
        %v727 = vpop.permute.xlu0 %726
        %v731 = vunpack.c.l.b16 %v668
        %v732 = vunpack.c.l.b16 %v669
        %v733 = vpack.c.b16 %v732, %v731
        %v737 = vunpack.c.l.b16 %v671
        %v738 = vunpack.c.l.b16 %v672
        %v739 = vpack.c.b16 %v738, %v737
        %741 = vrot.lane.b32.xlu0 %v733, 127
        %v742 = vpop.permute.xlu0 %741
        %v746 = vunpack.c.l.b16 %v674
        %v747 = vunpack.c.l.b16 %v675
        %v748 = vpack.c.b16 %v747, %v746
        %v752 = vunpack.c.l.b16 %v677
        %v753 = vunpack.c.l.b16 %v678
        %v754 = vpack.c.b16 %v753, %v752
        %756 = vrot.lane.b32.xlu0 %v748, 127
        %v757 = vpop.permute.xlu0 %756
        %759 = vrot.lane.b32.xlu0 %v733, 119
        %v760 = vpop.permute.xlu0 %759
        %v764 = vunpack.c.l.b16 %v679
        %v765 = vunpack.c.l.b16 %v680
        %v766 = vpack.c.b16 %v765, %v764
        %767 = vrot.lane.b32.xlu0 %v766, 9
        %v768 = vpop.permute.xlu0 %767
        %v771 = vunpack.c.l.b16 %v682
        %v772 = vunpack.c.l.b16 %v683
        %v773 = vpack.c.b16 %v772, %v771
        %774 = vrot.lane.b32.xlu0 %v773, 9
        %v775 = vpop.permute.xlu0 %774
        %776 = vrot.lane.b32.xlu0 %v766, 8
        %v777 = vpop.permute.xlu0 %776
        %v780 = vunpack.c.l.b16 %v685
        %v781 = vunpack.c.l.b16 %v686
        %v782 = vpack.c.b16 %v781, %v780
        %783 = vrot.lane.b32.xlu0 %v782, 9
        %v784 = vpop.permute.xlu0 %783
        %v787 = vunpack.c.l.b16 %v688
        %v788 = vunpack.c.l.b16 %v689
        %v789 = vpack.c.b16 %v788, %v787
        %790 = vrot.lane.b32.xlu0 %v789, 9
        %v791 = vpop.permute.xlu0 %790
        %792 = vrot.lane.b32.xlu0 %v782, 8
        %v793 = vpop.permute.xlu0 %792
        %794 = vrot.lane.b32.xlu0 %v766, 127
        %v795 = vpop.permute.xlu0 %794
        %796 = vrot.lane.b32.xlu0 %v739, 119
        %v797 = vpop.permute.xlu0 %796
        %798 = vrot.lane.b32.xlu0 %v742, 119
        %v799 = vpop.permute.xlu0 %798
        %800 = vrot.lane.b32.xlu0 %v768, 119
        %v801 = vpop.permute.xlu0 %800
        %802 = vrot.lane.b32.xlu0 %v775, 119
        %v803 = vpop.permute.xlu0 %802
        %804 = vrot.lane.b32.xlu0 %v777, 119
        %v805 = vpop.permute.xlu0 %804
        %806 = vrot.lane.b32.xlu0 %v784, 119
        %v807 = vpop.permute.xlu0 %806
        %808 = vrot.lane.b32.xlu0 %v791, 119
        %v809 = vpop.permute.xlu0 %808
        %810 = vrot.lane.b32.xlu0 %v793, 119
        %v811 = vpop.permute.xlu0 %810
        %812 = vrot.lane.b32.xlu0 %v766, 119
        %v813 = vpop.permute.xlu0 %812
        %814 = vrot.lane.b32.xlu0 %v773, 119
        %v815 = vpop.permute.xlu0 %814
        %816 = vrot.lane.b32.xlu0 %v795, 119
        %v817 = vpop.permute.xlu0 %816
        %829 = vmatprep.subr.bf16.mxu0 0
        %830 = vmatpush1.bf16.msra.mxu0 %v694
        %831 = vmatprep.subr.bf16.mxu0 0
        %832 = vmatpush1.bf16.msra.mxu0 %v700
        %833 = vmatprep.subr.bf16.mxu0 0
        %834 = vmatpush1.bf16.msra.mxu0 %v703
        %835 = vmatprep.subr.bf16.mxu0 0
        %836 = vmatpush1.bf16.msra.mxu0 %v709
        %837 = vmatprep.subr.bf16.mxu0 0
        %838 = vmatpush1.bf16.msra.mxu0 %v715
        %839 = vmatprep.subr.bf16.mxu0 0
        %840 = vmatpush1.bf16.msra.mxu0 %v718
        %841 = vmatprep.subr.bf16.mxu0 0
        %842 = vmatpush1.bf16.msra.mxu0 %v721
        %843 = vmatprep.subr.bf16.mxu0 0
        %844 = vmatpush1.bf16.msra.mxu0 %v724
        %845 = vmatprep.subr.bf16.mxu0 0
        %846 = vmatpush1.bf16.msra.mxu0 %v727
        %847 = vmatprep.subr.bf16.mxu0 0
        %848 = vmatpush1.bf16.msra.mxu0 %v733
        %849 = vmatprep.subr.bf16.mxu0 0
        %850 = vmatpush1.bf16.msra.mxu0 %v739
        %851 = vmatprep.subr.bf16.mxu0 0
        %852 = vmatpush1.bf16.msra.mxu0 %v742
        %853 = vmatprep.subr.bf16.mxu0 0
        %854 = vmatpush1.bf16.msra.mxu0 %v748
        %855 = vmatprep.subr.bf16.mxu0 0
        %856 = vmatpush1.bf16.msra.mxu0 %v754
        %857 = vmatprep.subr.bf16.mxu0 0
        %858 = vmatpush1.bf16.msra.mxu0 %v757
        %859 = vmatprep.subr.bf16.mxu0 0
        %860 = vmatpush1.bf16.msra.mxu0 %v760
        %861 = vmatprep.mubr.bf16.mxu0 %v536
        %862 = vmatmul.mubr.bf16.gmra.mrb[0].mxu0 %v535
        %v863 = vpop.f32.mrb[0].mxu0
        %v864 = vadd.f32 %v494, %v863
        %v865 = vpop.f32.mrb[0].mxu0
        %v866 = vpop.f32.mrb[0].mxu0
        %v867 = vadd.f32 %v499, %v866
        %v868 = vpop.f32.mrb[0].mxu0
        %869 = vmatprep.mubr.bf16.mxu0 %v540
        %870 = vmatmul.mubr.bf16.gmra.mrb[0].mxu0 %v539
        %v871 = vpop.f32.mrb[0].mxu0
        %v872 = vadd.f32 %v504, %v871
        %v873 = vpop.f32.mrb[0].mxu0
        %v874 = vpop.f32.mrb[0].mxu0
        %v875 = vadd.f32 %v509, %v874
        %v876 = vpop.f32.mrb[0].mxu0
        %877 = vdwg.mxu0
        %878 = vmatprep.subr.bf16.mxu0 0
        %879 = vmatpush1.bf16.msra.mxu0 %v797
        %880 = vmatprep.subr.bf16.mxu0 0
        %881 = vmatpush1.bf16.msra.mxu0 %v799
        %882 = vmatprep.subr.bf16.mxu0 0
        %883 = vmatpush1.bf16.msra.mxu0 %v801
        %884 = vmatprep.subr.bf16.mxu0 0
        %885 = vmatpush1.bf16.msra.mxu0 %v803
        %886 = vmatprep.subr.bf16.mxu0 0
        %887 = vmatpush1.bf16.msra.mxu0 %v805
        %888 = vmatprep.subr.bf16.mxu0 0
        %889 = vmatpush1.bf16.msra.mxu0 %v807
        %890 = vmatprep.subr.bf16.mxu0 0
        %891 = vmatpush1.bf16.msra.mxu0 %v809
        %892 = vmatprep.subr.bf16.mxu0 0
        %893 = vmatpush1.bf16.msra.mxu0 %v811
        %894 = vmatprep.subr.bf16.mxu0 0
        %895 = vmatpush1.bf16.msra.mxu0 %v813
        %896 = vmatprep.subr.bf16.mxu0 0
        %897 = vmatpush1.bf16.msra.mxu0 %v815
        %898 = vmatprep.subr.bf16.mxu0 0
        %899 = vmatpush1.bf16.msra.mxu0 %v817
        %900 = vmatprep.subr.bf16.mxu0 0
        %901 = vmatpush1.bf16.msra.mxu0 0
        %902 = vmatprep.subr.bf16.mxu0 0
        %903 = vmatpush1.bf16.msra.mxu0 0
        %904 = vmatprep.subr.bf16.mxu0 0
        %905 = vmatpush1.bf16.msra.mxu0 0
        %906 = vmatprep.subr.bf16.mxu0 0
        %907 = vmatpush1.bf16.msra.mxu0 0
        %908 = vmatprep.subr.bf16.mxu0 0
        %909 = vmatpush1.bf16.msra.mxu0 0
        %910 = vmatprep.mubr.bf16.mxu0 %v551
        %911 = vmatmul.mubr.bf16.gmra.mrb[0].mxu0 %v537
        %v912 = vpop.f32.mrb[0].mxu0
        %v913 = vadd.f32 %v864, %v912
        %v914 = vpop.f32.mrb[0].mxu0
        %v915 = vpop.f32.mrb[0].mxu0
        %v916 = vadd.f32 %v867, %v915
        %v917 = vpop.f32.mrb[0].mxu0
        %918 = vmatprep.mubr.bf16.mxu0 %v554
        %919 = vmatmul.mubr.bf16.gmra.mrb[0].mxu0 %v541
        %v920 = vpop.f32.mrb[0].mxu0
        %v921 = vadd.f32 %v872, %v920
        %v922 = vpop.f32.mrb[0].mxu0
        %v923 = vpop.f32.mrb[0].mxu0
        %v924 = vadd.f32 %v875, %v923
        %v925 = vpop.f32.mrb[0].mxu0
        %926 = vdwg.mxu0
        %927 = vst.msk [vmem:[%s266 + $0x8] sm:$0xff] %vm654, %v913
        %928 = vst.msk [vmem:[%s266 + $0x18] sm:$0xff] %vm654, %v916
        %929 = vst.msk [vmem:[%s266 + $0x28] sm:$0xff] %vm654, %v921
        %930 = vst.msk [vmem:[%s266 + $0x38] sm:$0xff] %vm654, %v924
        %s931 = sand.u32 %s139, 1
        %s932 = sand.u32 %s139, 1
        %s933 = smul.addr %s932, 64
        %s934 = scalar_lea.vmem [#allocation2], %s933
        // Predicated region
        $region37: #{en_down.1} parent=35 // pred_check
          %p935 = pneg %p149
        $region38: #{en_down.1} parent=35 // pred_check_branch
          %937 = sbr.rel (%p935) target = $region40
        $region39: #{en_down.1} parent=35 // pred_region
          %s938 = smul.u32 2, %s20
          %s939 = smul.addr %s19, 32
          %s940 = sadd.s32 %s938, %s939
          %s941 = smul.addr %s940, 8
          %s942 = scalar_lea.vmem %s4, %s941
          // Predicated region
          $region41: #{en_down.1} parent=39 // pred_check
            _
          $region42: #{en_down.1} parent=39 // pred_check_branch
            %944 = sbr.rel (0) target = $region44
          $region43: #{en_down.1} parent=39 // pred_region
            // Predicated region
            $region45: #{en_down.1} parent=43 // pred_check
              _
            $region46: #{en_down.1} parent=43 // pred_check_branch
              %946 = sbr.rel (0) target = $region48
            $region47: #{en_down.1} parent=43 // pred_region
              loop: start=0, step=1, limit=1
              $region49: #{en_down.1} parent=47 // loop_pre_header
                _
              $region50: #{en_down.1} parent=47 // loop_header
                %s948 = sphi 0, %s952
                %p949 = scmp.ge.s32.totalorder %s948, 1
                %s953 = sphi %s934, %s934
                %s954 = sphi %s942, %s942
              $region51: #{en_down.1} parent=47 // loop_header_branch
                %951 = sbr.rel (%p949) target = $region55
              $region52: #{en_down.1} parent=47 // loop_body
                %v955 = vld [vmem:[%s953] sm:$0xff]
                %956 = vst [vmem:[%s954] sm:$0xff] %v955
                %v957 = vld [vmem:[%s953 + $0x8] sm:$0xff]
                %958 = vst [vmem:[%s954 + $0x8] sm:$0xff] %v957
                %v959 = vld [vmem:[%s953 + $0x10] sm:$0xff]
                %960 = vst [vmem:[%s954 + $0x40] sm:$0xff] %v959
                %v961 = vld [vmem:[%s953 + $0x18] sm:$0xff]
                %962 = vst [vmem:[%s954 + $0x48] sm:$0xff] %v961
                %v963 = vld [vmem:[%s953 + $0x20] sm:$0xff]
                %964 = vst [vmem:[%s954 + $0x80] sm:$0xff] %v963
                %v965 = vld [vmem:[%s953 + $0x28] sm:$0xff]
                %966 = vst [vmem:[%s954 + $0x88] sm:$0xff] %v965
                %v967 = vld [vmem:[%s953 + $0x30] sm:$0xff]
                %968 = vst [vmem:[%s954 + $0xc0] sm:$0xff] %v967
                %v969 = vld [vmem:[%s953 + $0x38] sm:$0xff]
                %970 = vst [vmem:[%s954 + $0xc8] sm:$0xff] %v969
              $region53: #{en_down.1} parent=47 // loop_footer
                %s952 = sadd.s32 1, %s948
              $region54: #{en_down.1} parent=47 // loop_footer_branch
                %947 = sbr.rel target = $region50
              $region55: #{en_down.1} parent=47 // loop_exit
                _
            $region48: #{en_down.1} parent=43 // pred_fallthru
              _
            // Predicated region
            $region56: #{en_down.1} parent=43 // pred_check
              _
            $region57: #{en_down.1} parent=43 // pred_check_branch
              %972 = sbr.rel target = $region59
            $region58: #{en_down.1} parent=43 // pred_region
              _
            $region59: #{en_down.1} parent=43 // pred_fallthru
              _
          $region44: #{en_down.1} parent=39 // pred_fallthru
            _
          %973 = vnop
        $region40: #{en_down.1} parent=35 // pred_fallthru
          _
      $region36: #{en_down.1} parent=5 // pred_fallthru
        _
      %p974 = scmp.le.s32.totalorder 2, %s10
      // Predicated region
      $region60: #{en_down.1} parent=5 // pred_check
        %p975 = pneg %p974
      $region61: #{en_down.1} parent=5 // pred_check_branch
        %977 = sbr.rel (%p975) target = $region63
      $region62: #{en_down.1} parent=5 // pred_region
        %s978 = ssub.s32 %s10, 2
        // Predicated region
        $region64: #{en_down.1} parent=62 // pred_check
          %p979 = pneg %p155
        $region65: #{en_down.1} parent=62 // pred_check_branch
          %981 = sbr.rel (%p979) target = $region67
        $region66: #{en_down.1} parent=62 // pred_region
          %s982 = sand.u32 %s140, 1
          %s983 = sand.u32 %s140, 1
          %s984 = smul.addr %s983, 64
          %s985 = scalar_lea.vmem [#allocation2], %s984
        $region67: #{en_down.1} parent=62 // pred_fallthru
          _
      $region63: #{en_down.1} parent=5 // pred_fallthru
        _
    $region6: #{en_down.1} parent=1 // loop_footer
      %s14 = sadd.s32 1, %s10
    $region7: #{en_down.1} parent=1 // loop_footer_branch
      %9 = sbr.rel target = $region3
    $region8: #{en_down.1} parent=1 // loop_exit
      _

</llo_original>
